<compile_context>
chip_gen: v6e
topology: v6e:2x2x1
jax: 0.10.0
libtpu: 0.0.40
codegen_flags: <defaults>
</compile_context>

<pallas_src>
import jax
import jax.numpy as jnp
from jax.experimental import pallas as pl
from jax.experimental.pallas import tpu as pltpu


# --------------------------------------------------------------------------------------
# Kernel
# --------------------------------------------------------------------------------------
def _second_stage_kernel(
    lf0_ref,      # (B, N, T)        f32  linear_FS applied to FS columns of x_hat (+ b_lf)
    ybias_ref,    # (B, (T-1)*T)     f32  y_t * w_lf[:, -1] + b_lh, packed lane-dense per step
    fs_ref,       # (B, (T-1)*N)     f32  FS_output packed lane-dense (FS[:, t, :] at lanes t*N..)
    w_h_ref,      # (H, T + 4H)      bf16 [w_lh_h | W_hh stacked, gate order i,f,o,g]
    w_c_ref,      # (H, T)           bf16 w_lh_c (cell half of linear_hidden)
    w_attn_ref,   # (1, T)           f32  attn_layer.weight
    w_ih_ref,     # (N, 4H)          bf16 W_ih stacked, gate order i,f,o,g
    b_ref,        # (1, 4H)          f32  b_ih + b_hh, gate order i,f,o,g
    out_w_ref,    # (B, (T-1)*N)     f32  input_weighted, lane-dense
    out_e_ref,    # (B, (T-1)*H)     f32  input_encoded,  lane-dense
):
    B, N, T = lf0_ref.shape
    H = w_c_ref.shape[0]
    Tm1 = fs_ref.shape[1] // N
    f32 = jnp.float32
    bf16 = jnp.bfloat16

    # ---- loop-invariant loads / broadcasts (hoisted out of the recurrence) ------------
    lf0 = lf0_ref[...]                                                   # (B, N, T)
    ybias = ybias_ref[...]                                               # (B, Tm1*T)
    fs = fs_ref[...]                                                     # (B, Tm1*N)
    w_h = w_h_ref[...]                                                   # (H, T+4H) bf16
    w_c = w_c_ref[...]                                                   # (H, T)    bf16
    w_ih = w_ih_ref[...]                                                 # (N, 4H)   bf16
    w_attn_b = jnp.broadcast_to(w_attn_ref[...].reshape(1, 1, T), (B, N, T))
    bias = jnp.broadcast_to(b_ref[...], (B, 4 * H))                      # (B, 4H)

    h = jnp.zeros((B, H), f32)   # init_hidden
    c = jnp.zeros((B, H), f32)

    # Static full unroll (Tm1 = 7): gives static lane offsets for every slice/store.
    # For much larger T, switch to lax.fori_loop with bounded unroll to limit live ranges.
    for t in range(Tm1):
        # --- all h-consuming work in one stacked matmul -----------------------------
        h_all = jnp.dot(h.astype(bf16), w_h, preferred_element_type=f32)     # (B, T+4H)
        lh = (h_all[:, :T]
              + jnp.dot(c.astype(bf16), w_c, preferred_element_type=f32)
              + ybias[:, t * T:(t + 1) * T])                                  # (B, T)
        hh_gates = h_all[:, T:]                                               # (B, 4H)

        # --- input-attention scores + softmax over N ---------------------------------
        pre = jnp.tanh(lf0 + lh[:, None, :])                                  # (B, N, T)
        logits = jnp.sum(pre * w_attn_b, axis=-1)                             # (B, N)
        # |logits| <= ||w_attn||_1 (tanh-bounded), so exp cannot overflow: no max-sub.
        e = jnp.exp(logits)
        attn_w = e * pl.reciprocal(jnp.sum(e, axis=-1, keepdims=True), approx=True)

        weighted = attn_w * fs[:, t * N:(t + 1) * N]                          # (B, N)

        # --- one LSTM cell step: single stacked gate matmul + fused activations ------
        gates = (jnp.dot(weighted.astype(bf16), w_ih, preferred_element_type=f32)
                 + hh_gates + bias)                                           # (B, 4H) = [i|f|o|g]
        sig = jax.nn.sigmoid(gates[:, :3 * H])                                # (B, 3H)
        g_g = jnp.tanh(gates[:, 3 * H:])                                      # (B, H)
        i_g = sig[:, :H]
        f_g = sig[:, H:2 * H]
        o_g = sig[:, 2 * H:3 * H]
        c = f_g * c + i_g * g_g
        h = o_g * jnp.tanh(c)

        # lane-dense outputs: static lane-offset writes into the VMEM-resident output block
        out_w_ref[:, t * N:(t + 1) * N] = weighted
        out_e_ref[:, t * H:(t + 1) * H] = h


# --------------------------------------------------------------------------------------
# Wrapper: hoisted precomputation, weight packing/reordering, pallas_call, reshapes
# --------------------------------------------------------------------------------------
@jax.jit
def second_stage_pallas(FS_output, y_history, params):
    B, Tm1, N = FS_output.shape
    T = Tm1 + 1
    H = params["w_hh"].shape[1]          # w_hh: (4H, H)
    f32 = jnp.float32
    bf16 = jnp.bfloat16

    FS = FS_output.astype(f32)
    yh = y_history.astype(f32)

    w_lh_t = params["w_lh"].astype(f32).T            # (2H, T)
    b_lh = params["b_lh"].astype(f32)                # (T,)
    w_lf_t = params["w_lf"].astype(f32).T            # (T, T)
    b_lf = params["b_lf"].astype(f32)                # (T,)
    w_attn = params["w_attn"].astype(f32)            # (1, T)

    # Time-invariant part of linear_FS(x_hat): FS columns' contribution + bias.
    fsp = jnp.transpose(FS, (0, 2, 1))                                         # (B, N, T-1)
    lf0 = jnp.einsum("bnk,kt->bnt", fsp, w_lf_t[:Tm1, :]) + b_lf               # (B, N, T)

    # Per-step additive term independent of h/c: y_t * w_lf_t[T-1, :] + b_lh, lane-packed.
    ybias = (yh[:, :, None] * w_lf_t[Tm1, :][None, None, :] + b_lh).reshape(B, Tm1 * T)

    fs_packed = FS.reshape(B, Tm1 * N)                                         # (B, Tm1*N)

    # LSTM weights: W^T column blocks are in PyTorch gate order (i, f, g, o).
    # Reorder to (i, f, o, g) so one sigmoid covers the first 3H lanes and one tanh the last H.
    def reorder_cols(wT):                             # (in, 4H) -> (in, 4H)
        return jnp.concatenate(
            [wT[:, 0:H], wT[:, H:2 * H], wT[:, 3 * H:4 * H], wT[:, 2 * H:3 * H]], axis=1)

    w_ih_s = reorder_cols(params["w_ih"].astype(f32).T)          # (N, 4H)
    w_hh_s = reorder_cols(params["w_hh"].astype(f32).T)          # (H, 4H)
    b4 = (params["b_ih"] + params["b_hh"]).astype(f32)
    b_g = jnp.concatenate(
        [b4[0:H], b4[H:2 * H], b4[3 * H:4 * H], b4[2 * H:3 * H]]).reshape(1, 4 * H)

    w_lh_h = w_lh_t[:H, :]                                       # (H, T) hidden half
    w_lh_c = w_lh_t[H:, :]                                       # (H, T) cell half
    w_h_big = jnp.concatenate([w_lh_h, w_hh_s], axis=1).astype(bf16)   # (H, T+4H) bf16
    w_c_big = w_lh_c.astype(bf16)                                      # (H, T)    bf16
    w_ih_b = w_ih_s.astype(bf16)                                       # (N, 4H)   bf16

    out_w, out_e = pl.pallas_call(
        _second_stage_kernel,
        out_shape=(
            jax.ShapeDtypeStruct((B, Tm1 * N), f32),
            jax.ShapeDtypeStruct((B, Tm1 * H), f32),
        ),
        grid=(1,),                         # single invocation; recurrence is in-kernel
        in_specs=[
            pl.BlockSpec((B, N, T), lambda i: (0, 0, 0)),
            pl.BlockSpec((B, Tm1 * T), lambda i: (0, 0)),
            pl.BlockSpec((B, Tm1 * N), lambda i: (0, 0)),
            pl.BlockSpec((H, T + 4 * H), lambda i: (0, 0)),
            pl.BlockSpec((H, T), lambda i: (0, 0)),
            pl.BlockSpec((1, T), lambda i: (0, 0)),
            pl.BlockSpec((N, 4 * H), lambda i: (0, 0)),
            pl.BlockSpec((1, 4 * H), lambda i: (0, 0)),
        ],
        out_specs=(
            pl.BlockSpec((B, Tm1 * N), lambda i: (0, 0)),
            pl.BlockSpec((B, Tm1 * H), lambda i: (0, 0)),
        ),
        compiler_params=pltpu.CompilerParams(dimension_semantics=("arbitrary",)),
    )(lf0, ybias, fs_packed, w_h_big, w_c_big, w_attn, w_ih_b, b_g)

    # Back to PyTorch layout (batch, T-1, feature): pure reshapes, no transposes.
    return out_w.reshape(B, Tm1, N), out_e.reshape(B, Tm1, H)


# --------------------------------------------------------------------------------------
# Pure-JAX (f32) reference of the PyTorch forward (correctness check)
# --------------------------------------------------------------------------------------
def second_stage_reference(FS_output, y_history, params):
    B, Tm1, N = FS_output.shape
    H = params["w_hh"].shape[1]
    h = jnp.zeros((B, H), jnp.float32)
    c = jnp.zeros((B, H), jnp.float32)
    fsp = jnp.transpose(FS_output, (0, 2, 1))        # (B, N, T-1)
    ws, es = [], []
    for t in range(Tm1):
        hc = jnp.concatenate([h, c], axis=-1)
        lh = hc @ params["w_lh"].T + params["b_lh"]                        # (B, T)
        y_col = jnp.broadcast_to(y_history[:, t][:, None, None], (B, N, 1))
        x_hat = jnp.concatenate([fsp, y_col], axis=-1)                     # (B, N, T)
        lf = x_hat @ params["w_lf"].T + params["b_lf"]                     # (B, N, T)
        pre = jnp.tanh(lf + lh[:, None, :])
        logits = (pre @ params["w_attn"].T)[..., 0] + params["b_attn"][0]  # (B, N)
        attn_w = jax.nn.softmax(logits, axis=-1)
        weighted = attn_w * FS_output[:, t, :]
        gates = (weighted @ params["w_ih"].T + params["b_ih"]
                 + h @ params["w_hh"].T + params["b_hh"])
        i_g = jax.nn.sigmoid(gates[:, 0 * H:1 * H])
        f_g = jax.nn.sigmoid(gates[:, 1 * H:2 * H])
        g_g = jnp.tanh(gates[:, 2 * H:3 * H])
        o_g = jax.nn.sigmoid(gates[:, 3 * H:4 * H])
        c = f_g * c + i_g * g_g
        h = o_g * jnp.tanh(c)
        ws.append(weighted)
        es.append(h)
    return jnp.stack(ws, axis=1), jnp.stack(es, axis=1)


# --------------------------------------------------------------------------------------
# Main
# --------------------------------------------------------------------------------------
if __name__ == "__main__":
    # opt: input_size=4, T=8, SS_hidden_size=FS_hidden_size=16 (must be equal for the
    # original module's linear_hidden to type-check), batch=2.
    B, N, T, H = 2, 4, 8, 16
    Tm1 = T - 1

    key = jax.random.PRNGKey(0)
    keys = jax.random.split(key, 16)

    def uinit(k, shape, fan_in):
        bound = 1.0 / jnp.sqrt(float(fan_in))
        return jax.random.uniform(k, shape, jnp.float32, -bound, bound)

    params = {
        "w_lh": uinit(keys[0], (T, 2 * H), 2 * H),     # linear_hidden
        "b_lh": uinit(keys[1], (T,), 2 * H),
        "w_lf": uinit(keys[2], (T, T), T),             # linear_FS
        "b_lf": uinit(keys[3], (T,), T),
        "w_attn": uinit(keys[4], (1, T), T),           # attn_layer
        "b_attn": uinit(keys[5], (1,), T),
        "w_ih": uinit(keys[6], (4 * H, N), H),         # lstm weight_ih_l0
        "w_hh": uinit(keys[7], (4 * H, H), H),         # lstm weight_hh_l0
        "b_ih": uinit(keys[8], (4 * H,), H),
        "b_hh": uinit(keys[9], (4 * H,), H),
    }

    FS_output = jax.random.normal(keys[10], (B, Tm1, N), jnp.float32)
    y_history = jax.random.normal(keys[11], (B, Tm1), jnp.float32)

    iw, ie = second_stage_pallas(FS_output, y_history, params)
    jax.block_until_ready((iw, ie))

    iw_ref, ie_ref = second_stage_reference(FS_output, y_history, params)
    assert iw.shape == (B, Tm1, N) and ie.shape == (B, Tm1, H)
    # Tolerance accounts for bf16 MXU operands (error ~1e-3 scale compounded over the
    # 7-step recurrence) and the approx softmax reciprocal.
    assert jnp.allclose(iw, iw_ref, atol=2e-2, rtol=2e-2), "input_weighted mismatch"
    assert jnp.allclose(ie, ie_ref, atol=2e-2, rtol=2e-2), "input_encoded mismatch"

    print("KERNEL_OK")
</pallas_src>

<mosaic_0001>
module attributes {stable_mosaic.version = 11 : i64} {
  func.func @_second_stage_kernel(%arg0: i32, %arg1: memref<2x4x8xf32, #tpu.memory_space<vmem>>, %arg2: memref<2x56xf32, #tpu.memory_space<vmem>>, %arg3: memref<2x28xf32, #tpu.memory_space<vmem>>, %arg4: memref<16x72xbf16, #tpu.memory_space<vmem>>, %arg5: memref<16x8xbf16, #tpu.memory_space<vmem>>, %arg6: memref<1x8xf32, #tpu.memory_space<vmem>>, %arg7: memref<4x64xbf16, #tpu.memory_space<vmem>>, %arg8: memref<1x64xf32, #tpu.memory_space<vmem>>, %arg9: memref<2x28xf32, #tpu.memory_space<vmem>>, %arg10: memref<2x112xf32, #tpu.memory_space<vmem>>) attributes {dimension_semantics = [#tpu.dimension_semantics<arbitrary>], iteration_bounds = array<i64: 1>, scalar_prefetch = 0 : i64, scratch_operands = 0 : i64, tpu.core_type = #tpu.core_type<tc>, window_params = [{pipeline_mode = #tpu.pipeline_mode<synchronous>, transform_indices = @transform_0, window_bounds = array<i64: 2, 4, 8>}, {pipeline_mode = #tpu.pipeline_mode<synchronous>, transform_indices = @transform_1, window_bounds = array<i64: 2, 56>}, {pipeline_mode = #tpu.pipeline_mode<synchronous>, transform_indices = @transform_2, window_bounds = array<i64: 2, 28>}, {pipeline_mode = #tpu.pipeline_mode<synchronous>, transform_indices = @transform_3, window_bounds = array<i64: 16, 72>}, {pipeline_mode = #tpu.pipeline_mode<synchronous>, transform_indices = @transform_4, window_bounds = array<i64: 16, 8>}, {pipeline_mode = #tpu.pipeline_mode<synchronous>, transform_indices = @transform_5, window_bounds = array<i64: 1, 8>}, {pipeline_mode = #tpu.pipeline_mode<synchronous>, transform_indices = @transform_6, window_bounds = array<i64: 4, 64>}, {pipeline_mode = #tpu.pipeline_mode<synchronous>, transform_indices = @transform_7, window_bounds = array<i64: 1, 64>}, {pipeline_mode = #tpu.pipeline_mode<synchronous>, transform_indices = @transform_8, window_bounds = array<i64: 2, 28>}, {pipeline_mode = #tpu.pipeline_mode<synchronous>, transform_indices = @transform_9, window_bounds = array<i64: 2, 112>}]} {
    %c0 = arith.constant 0 : index
    %c0_0 = arith.constant 0 : index
    %c0_1 = arith.constant 0 : index
    %0 = vector.load %arg1[%c0, %c0_0, %c0_1] : memref<2x4x8xf32, #tpu.memory_space<vmem>>, vector<2x4x8xf32>
    %c0_2 = arith.constant 0 : index
    %c0_3 = arith.constant 0 : index
    %1 = vector.load %arg2[%c0_2, %c0_3] : memref<2x56xf32, #tpu.memory_space<vmem>>, vector<2x56xf32>
    %c0_4 = arith.constant 0 : index
    %c0_5 = arith.constant 0 : index
    %2 = vector.load %arg3[%c0_4, %c0_5] : memref<2x28xf32, #tpu.memory_space<vmem>>, vector<2x28xf32>
    %c0_6 = arith.constant 0 : index
    %c0_7 = arith.constant 0 : index
    %3 = vector.load %arg4[%c0_6, %c0_7] : memref<16x72xbf16, #tpu.memory_space<vmem>>, vector<16x72xbf16>
    %c0_8 = arith.constant 0 : index
    %c0_9 = arith.constant 0 : index
    %4 = vector.load %arg5[%c0_8, %c0_9] : memref<16x8xbf16, #tpu.memory_space<vmem>>, vector<16x8xbf16>
    %c0_10 = arith.constant 0 : index
    %c0_11 = arith.constant 0 : index
    %5 = vector.load %arg7[%c0_10, %c0_11] : memref<4x64xbf16, #tpu.memory_space<vmem>>, vector<4x64xbf16>
    %c0_12 = arith.constant 0 : index
    %c0_13 = arith.constant 0 : index
    %6 = vector.load %arg6[%c0_12, %c0_13] : memref<1x8xf32, #tpu.memory_space<vmem>>, vector<1x8xf32>
    %7 = vector.shape_cast %6 : vector<1x8xf32> to vector<1x1x8xf32>
    %8 = vector.shape_cast %7 : vector<1x1x8xf32> to vector<1x1x8xf32>
    %9 = vector.broadcast %8 : vector<1x1x8xf32> to vector<2x4x8xf32>
    %c0_14 = arith.constant 0 : index
    %c0_15 = arith.constant 0 : index
    %10 = vector.load %arg8[%c0_14, %c0_15] : memref<1x64xf32, #tpu.memory_space<vmem>>, vector<1x64xf32>
    %11 = vector.shape_cast %10 : vector<1x64xf32> to vector<1x64xf32>
    %12 = vector.broadcast %11 : vector<1x64xf32> to vector<2x64xf32>
    %cst = arith.constant 0.000000e+00 : f32
    %13 = vector.broadcast %cst : f32 to vector<2x16xf32>
    %cst_16 = arith.constant 0.000000e+00 : f32
    %14 = vector.broadcast %cst_16 : f32 to vector<2x16xf32>
    %15 = arith.truncf %13 : vector<2x16xf32> to vector<2x16xbf16>
    %cst_17 = arith.constant dense<0.000000e+00> : vector<2x72xf32>
    %16 = tpu.matmul %15, %3, %cst_17 {dimension_numbers = #tpu.dot_dimension_numbers<[1], [0], [0], [1], [0, 0, 1, 1], [], []>} : vector<2x16xbf16>, vector<16x72xbf16>, vector<2x72xf32> -> vector<2x72xf32>
    %17 = vector.extract_strided_slice %16 {offsets = [0, 0], sizes = [2, 8], strides = [1, 1]} : vector<2x72xf32> to vector<2x8xf32>
    %18 = arith.truncf %14 : vector<2x16xf32> to vector<2x16xbf16>
    %cst_18 = arith.constant dense<0.000000e+00> : vector<2x8xf32>
    %19 = tpu.matmul %18, %4, %cst_18 {dimension_numbers = #tpu.dot_dimension_numbers<[1], [0], [0], [1], [0, 0, 1, 1], [], []>} : vector<2x16xbf16>, vector<16x8xbf16>, vector<2x8xf32> -> vector<2x8xf32>
    %20 = arith.addf %17, %19 : vector<2x8xf32>
    %21 = vector.extract_strided_slice %1 {offsets = [0, 0], sizes = [2, 8], strides = [1, 1]} : vector<2x56xf32> to vector<2x8xf32>
    %22 = arith.addf %20, %21 : vector<2x8xf32>
    %23 = vector.extract_strided_slice %16 {offsets = [0, 8], sizes = [2, 64], strides = [1, 1]} : vector<2x72xf32> to vector<2x64xf32>
    %24 = vector.shape_cast %22 : vector<2x8xf32> to vector<2x1x8xf32>
    %25 = vector.broadcast %24 : vector<2x1x8xf32> to vector<2x4x8xf32>
    %26 = arith.addf %0, %25 : vector<2x4x8xf32>
    %27 = math.tanh %26 : vector<2x4x8xf32>
    %28 = arith.mulf %27, %9 : vector<2x4x8xf32>
    %cst_19 = arith.constant dense<0.000000e+00> : vector<2x4xf32>
    %29 = vector.multi_reduction <add>, %28, %cst_19 [2] : vector<2x4x8xf32> to vector<2x4xf32>
    %30 = math.exp %29 : vector<2x4xf32>
    %cst_20 = arith.constant dense<0.000000e+00> : vector<2xf32>
    %31 = vector.multi_reduction <add>, %30, %cst_20 [1] : vector<2x4xf32> to vector<2xf32>
    %32 = vector.shape_cast %31 : vector<2xf32> to vector<2x1xf32>
    %33 = tpu.reciprocal %32 {approx = true} : vector<2x1xf32> -> vector<2x1xf32>
    %34 = vector.broadcast %33 : vector<2x1xf32> to vector<2x4xf32>
    %35 = arith.mulf %30, %34 : vector<2x4xf32>
    %36 = vector.extract_strided_slice %2 {offsets = [0, 0], sizes = [2, 4], strides = [1, 1]} : vector<2x28xf32> to vector<2x4xf32>
    %37 = arith.mulf %35, %36 : vector<2x4xf32>
    %38 = arith.truncf %37 : vector<2x4xf32> to vector<2x4xbf16>
    %cst_21 = arith.constant dense<0.000000e+00> : vector<2x64xf32>
    %39 = tpu.matmul %38, %5, %cst_21 {dimension_numbers = #tpu.dot_dimension_numbers<[1], [0], [0], [1], [0, 0, 1, 1], [], []>} : vector<2x4xbf16>, vector<4x64xbf16>, vector<2x64xf32> -> vector<2x64xf32>
    %40 = arith.addf %39, %23 : vector<2x64xf32>
    %41 = arith.addf %40, %12 : vector<2x64xf32>
    %42 = vector.extract_strided_slice %41 {offsets = [0, 0], sizes = [2, 48], strides = [1, 1]} : vector<2x64xf32> to vector<2x48xf32>
    %43 = arith.negf %42 : vector<2x48xf32>
    %44 = math.exp %43 : vector<2x48xf32>
    %cst_22 = arith.constant 1.000000e+00 : f32
    %45 = vector.broadcast %cst_22 : f32 to vector<2x48xf32>
    %46 = arith.addf %45, %44 : vector<2x48xf32>
    %47 = arith.divf %45, %46 : vector<2x48xf32>
    %48 = vector.extract_strided_slice %41 {offsets = [0, 48], sizes = [2, 16], strides = [1, 1]} : vector<2x64xf32> to vector<2x16xf32>
    %49 = math.tanh %48 : vector<2x16xf32>
    %50 = vector.extract_strided_slice %47 {offsets = [0, 0], sizes = [2, 16], strides = [1, 1]} : vector<2x48xf32> to vector<2x16xf32>
    %51 = vector.extract_strided_slice %47 {offsets = [0, 16], sizes = [2, 16], strides = [1, 1]} : vector<2x48xf32> to vector<2x16xf32>
    %52 = vector.extract_strided_slice %47 {offsets = [0, 32], sizes = [2, 16], strides = [1, 1]} : vector<2x48xf32> to vector<2x16xf32>
    %53 = arith.mulf %51, %14 : vector<2x16xf32>
    %54 = arith.mulf %50, %49 : vector<2x16xf32>
    %55 = arith.addf %53, %54 : vector<2x16xf32>
    %56 = math.tanh %55 : vector<2x16xf32>
    %57 = arith.mulf %52, %56 : vector<2x16xf32>
    %c0_23 = arith.constant 0 : index
    %c0_24 = arith.constant 0 : index
    %58 = vector.load %arg9[%c0_23, %c0_24] : memref<2x28xf32, #tpu.memory_space<vmem>>, vector<2x4xf32>
    tpu.vector_store %arg9[%c0_23, %c0_24], %37 {strides = array<i32>} : memref<2x28xf32, #tpu.memory_space<vmem>>, vector<2x4xf32>,
    %c0_25 = arith.constant 0 : index
    %c0_26 = arith.constant 0 : index
    %59 = vector.load %arg10[%c0_25, %c0_26] : memref<2x112xf32, #tpu.memory_space<vmem>>, vector<2x16xf32>
    tpu.vector_store %arg10[%c0_25, %c0_26], %57 {strides = array<i32>} : memref<2x112xf32, #tpu.memory_space<vmem>>, vector<2x16xf32>,
    %60 = arith.truncf %57 : vector<2x16xf32> to vector<2x16xbf16>
    %cst_27 = arith.constant dense<0.000000e+00> : vector<2x72xf32>
    %61 = tpu.matmul %60, %3, %cst_27 {dimension_numbers = #tpu.dot_dimension_numbers<[1], [0], [0], [1], [0, 0, 1, 1], [], []>} : vector<2x16xbf16>, vector<16x72xbf16>, vector<2x72xf32> -> vector<2x72xf32>
    %62 = vector.extract_strided_slice %61 {offsets = [0, 0], sizes = [2, 8], strides = [1, 1]} : vector<2x72xf32> to vector<2x8xf32>
    %63 = arith.truncf %55 : vector<2x16xf32> to vector<2x16xbf16>
    %cst_28 = arith.constant dense<0.000000e+00> : vector<2x8xf32>
    %64 = tpu.matmul %63, %4, %cst_28 {dimension_numbers = #tpu.dot_dimension_numbers<[1], [0], [0], [1], [0, 0, 1, 1], [], []>} : vector<2x16xbf16>, vector<16x8xbf16>, vector<2x8xf32> -> vector<2x8xf32>
    %65 = arith.addf %62, %64 : vector<2x8xf32>
    %66 = vector.extract_strided_slice %1 {offsets = [0, 8], sizes = [2, 8], strides = [1, 1]} : vector<2x56xf32> to vector<2x8xf32>
    %67 = arith.addf %65, %66 : vector<2x8xf32>
    %68 = vector.extract_strided_slice %61 {offsets = [0, 8], sizes = [2, 64], strides = [1, 1]} : vector<2x72xf32> to vector<2x64xf32>
    %69 = vector.shape_cast %67 : vector<2x8xf32> to vector<2x1x8xf32>
    %70 = vector.broadcast %69 : vector<2x1x8xf32> to vector<2x4x8xf32>
    %71 = arith.addf %0, %70 : vector<2x4x8xf32>
    %72 = math.tanh %71 : vector<2x4x8xf32>
    %73 = arith.mulf %72, %9 : vector<2x4x8xf32>
    %cst_29 = arith.constant dense<0.000000e+00> : vector<2x4xf32>
    %74 = vector.multi_reduction <add>, %73, %cst_29 [2] : vector<2x4x8xf32> to vector<2x4xf32>
    %75 = math.exp %74 : vector<2x4xf32>
    %cst_30 = arith.constant dense<0.000000e+00> : vector<2xf32>
    %76 = vector.multi_reduction <add>, %75, %cst_30 [1] : vector<2x4xf32> to vector<2xf32>
    %77 = vector.shape_cast %76 : vector<2xf32> to vector<2x1xf32>
    %78 = tpu.reciprocal %77 {approx = true} : vector<2x1xf32> -> vector<2x1xf32>
    %79 = vector.broadcast %78 : vector<2x1xf32> to vector<2x4xf32>
    %80 = arith.mulf %75, %79 : vector<2x4xf32>
    %81 = vector.extract_strided_slice %2 {offsets = [0, 4], sizes = [2, 4], strides = [1, 1]} : vector<2x28xf32> to vector<2x4xf32>
    %82 = arith.mulf %80, %81 : vector<2x4xf32>
    %83 = arith.truncf %82 : vector<2x4xf32> to vector<2x4xbf16>
    %cst_31 = arith.constant dense<0.000000e+00> : vector<2x64xf32>
    %84 = tpu.matmul %83, %5, %cst_31 {dimension_numbers = #tpu.dot_dimension_numbers<[1], [0], [0], [1], [0, 0, 1, 1], [], []>} : vector<2x4xbf16>, vector<4x64xbf16>, vector<2x64xf32> -> vector<2x64xf32>
    %85 = arith.addf %84, %68 : vector<2x64xf32>
    %86 = arith.addf %85, %12 : vector<2x64xf32>
    %87 = vector.extract_strided_slice %86 {offsets = [0, 0], sizes = [2, 48], strides = [1, 1]} : vector<2x64xf32> to vector<2x48xf32>
    %88 = arith.negf %87 : vector<2x48xf32>
    %89 = math.exp %88 : vector<2x48xf32>
    %cst_32 = arith.constant 1.000000e+00 : f32
    %90 = vector.broadcast %cst_32 : f32 to vector<2x48xf32>
    %91 = arith.addf %90, %89 : vector<2x48xf32>
    %92 = arith.divf %90, %91 : vector<2x48xf32>
    %93 = vector.extract_strided_slice %86 {offsets = [0, 48], sizes = [2, 16], strides = [1, 1]} : vector<2x64xf32> to vector<2x16xf32>
    %94 = math.tanh %93 : vector<2x16xf32>
    %95 = vector.extract_strided_slice %92 {offsets = [0, 0], sizes = [2, 16], strides = [1, 1]} : vector<2x48xf32> to vector<2x16xf32>
    %96 = vector.extract_strided_slice %92 {offsets = [0, 16], sizes = [2, 16], strides = [1, 1]} : vector<2x48xf32> to vector<2x16xf32>
    %97 = vector.extract_strided_slice %92 {offsets = [0, 32], sizes = [2, 16], strides = [1, 1]} : vector<2x48xf32> to vector<2x16xf32>
    %98 = arith.mulf %96, %55 : vector<2x16xf32>
    %99 = arith.mulf %95, %94 : vector<2x16xf32>
    %100 = arith.addf %98, %99 : vector<2x16xf32>
    %101 = math.tanh %100 : vector<2x16xf32>
    %102 = arith.mulf %97, %101 : vector<2x16xf32>
    %c0_33 = arith.constant 0 : index
    %c4 = arith.constant 4 : index
    %103 = vector.load %arg9[%c0_33, %c4] : memref<2x28xf32, #tpu.memory_space<vmem>>, vector<2x4xf32>
    tpu.vector_store %arg9[%c0_33, %c4], %82 {strides = array<i32>} : memref<2x28xf32, #tpu.memory_space<vmem>>, vector<2x4xf32>,
    %c0_34 = arith.constant 0 : index
    %c16 = arith.constant 16 : index
    %104 = vector.load %arg10[%c0_34, %c16] : memref<2x112xf32, #tpu.memory_space<vmem>>, vector<2x16xf32>
    tpu.vector_store %arg10[%c0_34, %c16], %102 {strides = array<i32>} : memref<2x112xf32, #tpu.memory_space<vmem>>, vector<2x16xf32>,
    %105 = arith.truncf %102 : vector<2x16xf32> to vector<2x16xbf16>
    %cst_35 = arith.constant dense<0.000000e+00> : vector<2x72xf32>
    %106 = tpu.matmul %105, %3, %cst_35 {dimension_numbers = #tpu.dot_dimension_numbers<[1], [0], [0], [1], [0, 0, 1, 1], [], []>} : vector<2x16xbf16>, vector<16x72xbf16>, vector<2x72xf32> -> vector<2x72xf32>
    %107 = vector.extract_strided_slice %106 {offsets = [0, 0], sizes = [2, 8], strides = [1, 1]} : vector<2x72xf32> to vector<2x8xf32>
    %108 = arith.truncf %100 : vector<2x16xf32> to vector<2x16xbf16>
    %cst_36 = arith.constant dense<0.000000e+00> : vector<2x8xf32>
    %109 = tpu.matmul %108, %4, %cst_36 {dimension_numbers = #tpu.dot_dimension_numbers<[1], [0], [0], [1], [0, 0, 1, 1], [], []>} : vector<2x16xbf16>, vector<16x8xbf16>, vector<2x8xf32> -> vector<2x8xf32>
    %110 = arith.addf %107, %109 : vector<2x8xf32>
    %111 = vector.extract_strided_slice %1 {offsets = [0, 16], sizes = [2, 8], strides = [1, 1]} : vector<2x56xf32> to vector<2x8xf32>
    %112 = arith.addf %110, %111 : vector<2x8xf32>
    %113 = vector.extract_strided_slice %106 {offsets = [0, 8], sizes = [2, 64], strides = [1, 1]} : vector<2x72xf32> to vector<2x64xf32>
    %114 = vector.shape_cast %112 : vector<2x8xf32> to vector<2x1x8xf32>
    %115 = vector.broadcast %114 : vector<2x1x8xf32> to vector<2x4x8xf32>
    %116 = arith.addf %0, %115 : vector<2x4x8xf32>
    %117 = math.tanh %116 : vector<2x4x8xf32>
    %118 = arith.mulf %117, %9 : vector<2x4x8xf32>
    %cst_37 = arith.constant dense<0.000000e+00> : vector<2x4xf32>
    %119 = vector.multi_reduction <add>, %118, %cst_37 [2] : vector<2x4x8xf32> to vector<2x4xf32>
    %120 = math.exp %119 : vector<2x4xf32>
    %cst_38 = arith.constant dense<0.000000e+00> : vector<2xf32>
    %121 = vector.multi_reduction <add>, %120, %cst_38 [1] : vector<2x4xf32> to vector<2xf32>
    %122 = vector.shape_cast %121 : vector<2xf32> to vector<2x1xf32>
    %123 = tpu.reciprocal %122 {approx = true} : vector<2x1xf32> -> vector<2x1xf32>
    %124 = vector.broadcast %123 : vector<2x1xf32> to vector<2x4xf32>
    %125 = arith.mulf %120, %124 : vector<2x4xf32>
    %126 = vector.extract_strided_slice %2 {offsets = [0, 8], sizes = [2, 4], strides = [1, 1]} : vector<2x28xf32> to vector<2x4xf32>
    %127 = arith.mulf %125, %126 : vector<2x4xf32>
    %128 = arith.truncf %127 : vector<2x4xf32> to vector<2x4xbf16>
    %cst_39 = arith.constant dense<0.000000e+00> : vector<2x64xf32>
    %129 = tpu.matmul %128, %5, %cst_39 {dimension_numbers = #tpu.dot_dimension_numbers<[1], [0], [0], [1], [0, 0, 1, 1], [], []>} : vector<2x4xbf16>, vector<4x64xbf16>, vector<2x64xf32> -> vector<2x64xf32>
    %130 = arith.addf %129, %113 : vector<2x64xf32>
    %131 = arith.addf %130, %12 : vector<2x64xf32>
    %132 = vector.extract_strided_slice %131 {offsets = [0, 0], sizes = [2, 48], strides = [1, 1]} : vector<2x64xf32> to vector<2x48xf32>
    %133 = arith.negf %132 : vector<2x48xf32>
    %134 = math.exp %133 : vector<2x48xf32>
    %cst_40 = arith.constant 1.000000e+00 : f32
    %135 = vector.broadcast %cst_40 : f32 to vector<2x48xf32>
    %136 = arith.addf %135, %134 : vector<2x48xf32>
    %137 = arith.divf %135, %136 : vector<2x48xf32>
    %138 = vector.extract_strided_slice %131 {offsets = [0, 48], sizes = [2, 16], strides = [1, 1]} : vector<2x64xf32> to vector<2x16xf32>
    %139 = math.tanh %138 : vector<2x16xf32>
    %140 = vector.extract_strided_slice %137 {offsets = [0, 0], sizes = [2, 16], strides = [1, 1]} : vector<2x48xf32> to vector<2x16xf32>
    %141 = vector.extract_strided_slice %137 {offsets = [0, 16], sizes = [2, 16], strides = [1, 1]} : vector<2x48xf32> to vector<2x16xf32>
    %142 = vector.extract_strided_slice %137 {offsets = [0, 32], sizes = [2, 16], strides = [1, 1]} : vector<2x48xf32> to vector<2x16xf32>
    %143 = arith.mulf %141, %100 : vector<2x16xf32>
    %144 = arith.mulf %140, %139 : vector<2x16xf32>
    %145 = arith.addf %143, %144 : vector<2x16xf32>
    %146 = math.tanh %145 : vector<2x16xf32>
    %147 = arith.mulf %142, %146 : vector<2x16xf32>
    %c0_41 = arith.constant 0 : index
    %c8 = arith.constant 8 : index
    %148 = vector.load %arg9[%c0_41, %c8] : memref<2x28xf32, #tpu.memory_space<vmem>>, vector<2x4xf32>
    tpu.vector_store %arg9[%c0_41, %c8], %127 {strides = array<i32>} : memref<2x28xf32, #tpu.memory_space<vmem>>, vector<2x4xf32>,
    %c0_42 = arith.constant 0 : index
    %c32 = arith.constant 32 : index
    %149 = vector.load %arg10[%c0_42, %c32] : memref<2x112xf32, #tpu.memory_space<vmem>>, vector<2x16xf32>
    tpu.vector_store %arg10[%c0_42, %c32], %147 {strides = array<i32>} : memref<2x112xf32, #tpu.memory_space<vmem>>, vector<2x16xf32>,
    %150 = arith.truncf %147 : vector<2x16xf32> to vector<2x16xbf16>
    %cst_43 = arith.constant dense<0.000000e+00> : vector<2x72xf32>
    %151 = tpu.matmul %150, %3, %cst_43 {dimension_numbers = #tpu.dot_dimension_numbers<[1], [0], [0], [1], [0, 0, 1, 1], [], []>} : vector<2x16xbf16>, vector<16x72xbf16>, vector<2x72xf32> -> vector<2x72xf32>
    %152 = vector.extract_strided_slice %151 {offsets = [0, 0], sizes = [2, 8], strides = [1, 1]} : vector<2x72xf32> to vector<2x8xf32>
    %153 = arith.truncf %145 : vector<2x16xf32> to vector<2x16xbf16>
    %cst_44 = arith.constant dense<0.000000e+00> : vector<2x8xf32>
    %154 = tpu.matmul %153, %4, %cst_44 {dimension_numbers = #tpu.dot_dimension_numbers<[1], [0], [0], [1], [0, 0, 1, 1], [], []>} : vector<2x16xbf16>, vector<16x8xbf16>, vector<2x8xf32> -> vector<2x8xf32>
    %155 = arith.addf %152, %154 : vector<2x8xf32>
    %156 = vector.extract_strided_slice %1 {offsets = [0, 24], sizes = [2, 8], strides = [1, 1]} : vector<2x56xf32> to vector<2x8xf32>
    %157 = arith.addf %155, %156 : vector<2x8xf32>
    %158 = vector.extract_strided_slice %151 {offsets = [0, 8], sizes = [2, 64], strides = [1, 1]} : vector<2x72xf32> to vector<2x64xf32>
    %159 = vector.shape_cast %157 : vector<2x8xf32> to vector<2x1x8xf32>
    %160 = vector.broadcast %159 : vector<2x1x8xf32> to vector<2x4x8xf32>
    %161 = arith.addf %0, %160 : vector<2x4x8xf32>
    %162 = math.tanh %161 : vector<2x4x8xf32>
    %163 = arith.mulf %162, %9 : vector<2x4x8xf32>
    %cst_45 = arith.constant dense<0.000000e+00> : vector<2x4xf32>
    %164 = vector.multi_reduction <add>, %163, %cst_45 [2] : vector<2x4x8xf32> to vector<2x4xf32>
    %165 = math.exp %164 : vector<2x4xf32>
    %cst_46 = arith.constant dense<0.000000e+00> : vector<2xf32>
    %166 = vector.multi_reduction <add>, %165, %cst_46 [1] : vector<2x4xf32> to vector<2xf32>
    %167 = vector.shape_cast %166 : vector<2xf32> to vector<2x1xf32>
    %168 = tpu.reciprocal %167 {approx = true} : vector<2x1xf32> -> vector<2x1xf32>
    %169 = vector.broadcast %168 : vector<2x1xf32> to vector<2x4xf32>
    %170 = arith.mulf %165, %169 : vector<2x4xf32>
    %171 = vector.extract_strided_slice %2 {offsets = [0, 12], sizes = [2, 4], strides = [1, 1]} : vector<2x28xf32> to vector<2x4xf32>
    %172 = arith.mulf %170, %171 : vector<2x4xf32>
    %173 = arith.truncf %172 : vector<2x4xf32> to vector<2x4xbf16>
    %cst_47 = arith.constant dense<0.000000e+00> : vector<2x64xf32>
    %174 = tpu.matmul %173, %5, %cst_47 {dimension_numbers = #tpu.dot_dimension_numbers<[1], [0], [0], [1], [0, 0, 1, 1], [], []>} : vector<2x4xbf16>, vector<4x64xbf16>, vector<2x64xf32> -> vector<2x64xf32>
    %175 = arith.addf %174, %158 : vector<2x64xf32>
    %176 = arith.addf %175, %12 : vector<2x64xf32>
    %177 = vector.extract_strided_slice %176 {offsets = [0, 0], sizes = [2, 48], strides = [1, 1]} : vector<2x64xf32> to vector<2x48xf32>
    %178 = arith.negf %177 : vector<2x48xf32>
    %179 = math.exp %178 : vector<2x48xf32>
    %cst_48 = arith.constant 1.000000e+00 : f32
    %180 = vector.broadcast %cst_48 : f32 to vector<2x48xf32>
    %181 = arith.addf %180, %179 : vector<2x48xf32>
    %182 = arith.divf %180, %181 : vector<2x48xf32>
    %183 = vector.extract_strided_slice %176 {offsets = [0, 48], sizes = [2, 16], strides = [1, 1]} : vector<2x64xf32> to vector<2x16xf32>
    %184 = math.tanh %183 : vector<2x16xf32>
    %185 = vector.extract_strided_slice %182 {offsets = [0, 0], sizes = [2, 16], strides = [1, 1]} : vector<2x48xf32> to vector<2x16xf32>
    %186 = vector.extract_strided_slice %182 {offsets = [0, 16], sizes = [2, 16], strides = [1, 1]} : vector<2x48xf32> to vector<2x16xf32>
    %187 = vector.extract_strided_slice %182 {offsets = [0, 32], sizes = [2, 16], strides = [1, 1]} : vector<2x48xf32> to vector<2x16xf32>
    %188 = arith.mulf %186, %145 : vector<2x16xf32>
    %189 = arith.mulf %185, %184 : vector<2x16xf32>
    %190 = arith.addf %188, %189 : vector<2x16xf32>
    %191 = math.tanh %190 : vector<2x16xf32>
    %192 = arith.mulf %187, %191 : vector<2x16xf32>
    %c0_49 = arith.constant 0 : index
    %c12 = arith.constant 12 : index
    %193 = vector.load %arg9[%c0_49, %c12] : memref<2x28xf32, #tpu.memory_space<vmem>>, vector<2x4xf32>
    tpu.vector_store %arg9[%c0_49, %c12], %172 {strides = array<i32>} : memref<2x28xf32, #tpu.memory_space<vmem>>, vector<2x4xf32>,
    %c0_50 = arith.constant 0 : index
    %c48 = arith.constant 48 : index
    %194 = vector.load %arg10[%c0_50, %c48] : memref<2x112xf32, #tpu.memory_space<vmem>>, vector<2x16xf32>
    tpu.vector_store %arg10[%c0_50, %c48], %192 {strides = array<i32>} : memref<2x112xf32, #tpu.memory_space<vmem>>, vector<2x16xf32>,
    %195 = arith.truncf %192 : vector<2x16xf32> to vector<2x16xbf16>
    %cst_51 = arith.constant dense<0.000000e+00> : vector<2x72xf32>
    %196 = tpu.matmul %195, %3, %cst_51 {dimension_numbers = #tpu.dot_dimension_numbers<[1], [0], [0], [1], [0, 0, 1, 1], [], []>} : vector<2x16xbf16>, vector<16x72xbf16>, vector<2x72xf32> -> vector<2x72xf32>
    %197 = vector.extract_strided_slice %196 {offsets = [0, 0], sizes = [2, 8], strides = [1, 1]} : vector<2x72xf32> to vector<2x8xf32>
    %198 = arith.truncf %190 : vector<2x16xf32> to vector<2x16xbf16>
    %cst_52 = arith.constant dense<0.000000e+00> : vector<2x8xf32>
    %199 = tpu.matmul %198, %4, %cst_52 {dimension_numbers = #tpu.dot_dimension_numbers<[1], [0], [0], [1], [0, 0, 1, 1], [], []>} : vector<2x16xbf16>, vector<16x8xbf16>, vector<2x8xf32> -> vector<2x8xf32>
    %200 = arith.addf %197, %199 : vector<2x8xf32>
    %201 = vector.extract_strided_slice %1 {offsets = [0, 32], sizes = [2, 8], strides = [1, 1]} : vector<2x56xf32> to vector<2x8xf32>
    %202 = arith.addf %200, %201 : vector<2x8xf32>
    %203 = vector.extract_strided_slice %196 {offsets = [0, 8], sizes = [2, 64], strides = [1, 1]} : vector<2x72xf32> to vector<2x64xf32>
    %204 = vector.shape_cast %202 : vector<2x8xf32> to vector<2x1x8xf32>
    %205 = vector.broadcast %204 : vector<2x1x8xf32> to vector<2x4x8xf32>
    %206 = arith.addf %0, %205 : vector<2x4x8xf32>
    %207 = math.tanh %206 : vector<2x4x8xf32>
    %208 = arith.mulf %207, %9 : vector<2x4x8xf32>
    %cst_53 = arith.constant dense<0.000000e+00> : vector<2x4xf32>
    %209 = vector.multi_reduction <add>, %208, %cst_53 [2] : vector<2x4x8xf32> to vector<2x4xf32>
    %210 = math.exp %209 : vector<2x4xf32>
    %cst_54 = arith.constant dense<0.000000e+00> : vector<2xf32>
    %211 = vector.multi_reduction <add>, %210, %cst_54 [1] : vector<2x4xf32> to vector<2xf32>
    %212 = vector.shape_cast %211 : vector<2xf32> to vector<2x1xf32>
    %213 = tpu.reciprocal %212 {approx = true} : vector<2x1xf32> -> vector<2x1xf32>
    %214 = vector.broadcast %213 : vector<2x1xf32> to vector<2x4xf32>
    %215 = arith.mulf %210, %214 : vector<2x4xf32>
    %216 = vector.extract_strided_slice %2 {offsets = [0, 16], sizes = [2, 4], strides = [1, 1]} : vector<2x28xf32> to vector<2x4xf32>
    %217 = arith.mulf %215, %216 : vector<2x4xf32>
    %218 = arith.truncf %217 : vector<2x4xf32> to vector<2x4xbf16>
    %cst_55 = arith.constant dense<0.000000e+00> : vector<2x64xf32>
    %219 = tpu.matmul %218, %5, %cst_55 {dimension_numbers = #tpu.dot_dimension_numbers<[1], [0], [0], [1], [0, 0, 1, 1], [], []>} : vector<2x4xbf16>, vector<4x64xbf16>, vector<2x64xf32> -> vector<2x64xf32>
    %220 = arith.addf %219, %203 : vector<2x64xf32>
    %221 = arith.addf %220, %12 : vector<2x64xf32>
    %222 = vector.extract_strided_slice %221 {offsets = [0, 0], sizes = [2, 48], strides = [1, 1]} : vector<2x64xf32> to vector<2x48xf32>
    %223 = arith.negf %222 : vector<2x48xf32>
    %224 = math.exp %223 : vector<2x48xf32>
    %cst_56 = arith.constant 1.000000e+00 : f32
    %225 = vector.broadcast %cst_56 : f32 to vector<2x48xf32>
    %226 = arith.addf %225, %224 : vector<2x48xf32>
    %227 = arith.divf %225, %226 : vector<2x48xf32>
    %228 = vector.extract_strided_slice %221 {offsets = [0, 48], sizes = [2, 16], strides = [1, 1]} : vector<2x64xf32> to vector<2x16xf32>
    %229 = math.tanh %228 : vector<2x16xf32>
    %230 = vector.extract_strided_slice %227 {offsets = [0, 0], sizes = [2, 16], strides = [1, 1]} : vector<2x48xf32> to vector<2x16xf32>
    %231 = vector.extract_strided_slice %227 {offsets = [0, 16], sizes = [2, 16], strides = [1, 1]} : vector<2x48xf32> to vector<2x16xf32>
    %232 = vector.extract_strided_slice %227 {offsets = [0, 32], sizes = [2, 16], strides = [1, 1]} : vector<2x48xf32> to vector<2x16xf32>
    %233 = arith.mulf %231, %190 : vector<2x16xf32>
    %234 = arith.mulf %230, %229 : vector<2x16xf32>
    %235 = arith.addf %233, %234 : vector<2x16xf32>
    %236 = math.tanh %235 : vector<2x16xf32>
    %237 = arith.mulf %232, %236 : vector<2x16xf32>
    %c0_57 = arith.constant 0 : index
    %c16_58 = arith.constant 16 : index
    %238 = vector.load %arg9[%c0_57, %c16_58] : memref<2x28xf32, #tpu.memory_space<vmem>>, vector<2x4xf32>
    tpu.vector_store %arg9[%c0_57, %c16_58], %217 {strides = array<i32>} : memref<2x28xf32, #tpu.memory_space<vmem>>, vector<2x4xf32>,
    %c0_59 = arith.constant 0 : index
    %c64 = arith.constant 64 : index
    %239 = vector.load %arg10[%c0_59, %c64] : memref<2x112xf32, #tpu.memory_space<vmem>>, vector<2x16xf32>
    tpu.vector_store %arg10[%c0_59, %c64], %237 {strides = array<i32>} : memref<2x112xf32, #tpu.memory_space<vmem>>, vector<2x16xf32>,
    %240 = arith.truncf %237 : vector<2x16xf32> to vector<2x16xbf16>
    %cst_60 = arith.constant dense<0.000000e+00> : vector<2x72xf32>
    %241 = tpu.matmul %240, %3, %cst_60 {dimension_numbers = #tpu.dot_dimension_numbers<[1], [0], [0], [1], [0, 0, 1, 1], [], []>} : vector<2x16xbf16>, vector<16x72xbf16>, vector<2x72xf32> -> vector<2x72xf32>
    %242 = vector.extract_strided_slice %241 {offsets = [0, 0], sizes = [2, 8], strides = [1, 1]} : vector<2x72xf32> to vector<2x8xf32>
    %243 = arith.truncf %235 : vector<2x16xf32> to vector<2x16xbf16>
    %cst_61 = arith.constant dense<0.000000e+00> : vector<2x8xf32>
    %244 = tpu.matmul %243, %4, %cst_61 {dimension_numbers = #tpu.dot_dimension_numbers<[1], [0], [0], [1], [0, 0, 1, 1], [], []>} : vector<2x16xbf16>, vector<16x8xbf16>, vector<2x8xf32> -> vector<2x8xf32>
    %245 = arith.addf %242, %244 : vector<2x8xf32>
    %246 = vector.extract_strided_slice %1 {offsets = [0, 40], sizes = [2, 8], strides = [1, 1]} : vector<2x56xf32> to vector<2x8xf32>
    %247 = arith.addf %245, %246 : vector<2x8xf32>
    %248 = vector.extract_strided_slice %241 {offsets = [0, 8], sizes = [2, 64], strides = [1, 1]} : vector<2x72xf32> to vector<2x64xf32>
    %249 = vector.shape_cast %247 : vector<2x8xf32> to vector<2x1x8xf32>
    %250 = vector.broadcast %249 : vector<2x1x8xf32> to vector<2x4x8xf32>
    %251 = arith.addf %0, %250 : vector<2x4x8xf32>
    %252 = math.tanh %251 : vector<2x4x8xf32>
    %253 = arith.mulf %252, %9 : vector<2x4x8xf32>
    %cst_62 = arith.constant dense<0.000000e+00> : vector<2x4xf32>
    %254 = vector.multi_reduction <add>, %253, %cst_62 [2] : vector<2x4x8xf32> to vector<2x4xf32>
    %255 = math.exp %254 : vector<2x4xf32>
    %cst_63 = arith.constant dense<0.000000e+00> : vector<2xf32>
    %256 = vector.multi_reduction <add>, %255, %cst_63 [1] : vector<2x4xf32> to vector<2xf32>
    %257 = vector.shape_cast %256 : vector<2xf32> to vector<2x1xf32>
    %258 = tpu.reciprocal %257 {approx = true} : vector<2x1xf32> -> vector<2x1xf32>
    %259 = vector.broadcast %258 : vector<2x1xf32> to vector<2x4xf32>
    %260 = arith.mulf %255, %259 : vector<2x4xf32>
    %261 = vector.extract_strided_slice %2 {offsets = [0, 20], sizes = [2, 4], strides = [1, 1]} : vector<2x28xf32> to vector<2x4xf32>
    %262 = arith.mulf %260, %261 : vector<2x4xf32>
    %263 = arith.truncf %262 : vector<2x4xf32> to vector<2x4xbf16>
    %cst_64 = arith.constant dense<0.000000e+00> : vector<2x64xf32>
    %264 = tpu.matmul %263, %5, %cst_64 {dimension_numbers = #tpu.dot_dimension_numbers<[1], [0], [0], [1], [0, 0, 1, 1], [], []>} : vector<2x4xbf16>, vector<4x64xbf16>, vector<2x64xf32> -> vector<2x64xf32>
    %265 = arith.addf %264, %248 : vector<2x64xf32>
    %266 = arith.addf %265, %12 : vector<2x64xf32>
    %267 = vector.extract_strided_slice %266 {offsets = [0, 0], sizes = [2, 48], strides = [1, 1]} : vector<2x64xf32> to vector<2x48xf32>
    %268 = arith.negf %267 : vector<2x48xf32>
    %269 = math.exp %268 : vector<2x48xf32>
    %cst_65 = arith.constant 1.000000e+00 : f32
    %270 = vector.broadcast %cst_65 : f32 to vector<2x48xf32>
    %271 = arith.addf %270, %269 : vector<2x48xf32>
    %272 = arith.divf %270, %271 : vector<2x48xf32>
    %273 = vector.extract_strided_slice %266 {offsets = [0, 48], sizes = [2, 16], strides = [1, 1]} : vector<2x64xf32> to vector<2x16xf32>
    %274 = math.tanh %273 : vector<2x16xf32>
    %275 = vector.extract_strided_slice %272 {offsets = [0, 0], sizes = [2, 16], strides = [1, 1]} : vector<2x48xf32> to vector<2x16xf32>
    %276 = vector.extract_strided_slice %272 {offsets = [0, 16], sizes = [2, 16], strides = [1, 1]} : vector<2x48xf32> to vector<2x16xf32>
    %277 = vector.extract_strided_slice %272 {offsets = [0, 32], sizes = [2, 16], strides = [1, 1]} : vector<2x48xf32> to vector<2x16xf32>
    %278 = arith.mulf %276, %235 : vector<2x16xf32>
    %279 = arith.mulf %275, %274 : vector<2x16xf32>
    %280 = arith.addf %278, %279 : vector<2x16xf32>
    %281 = math.tanh %280 : vector<2x16xf32>
    %282 = arith.mulf %277, %281 : vector<2x16xf32>
    %c0_66 = arith.constant 0 : index
    %c20 = arith.constant 20 : index
    %283 = vector.load %arg9[%c0_66, %c20] : memref<2x28xf32, #tpu.memory_space<vmem>>, vector<2x4xf32>
    tpu.vector_store %arg9[%c0_66, %c20], %262 {strides = array<i32>} : memref<2x28xf32, #tpu.memory_space<vmem>>, vector<2x4xf32>,
    %c0_67 = arith.constant 0 : index
    %c80 = arith.constant 80 : index
    %284 = vector.load %arg10[%c0_67, %c80] : memref<2x112xf32, #tpu.memory_space<vmem>>, vector<2x16xf32>
    tpu.vector_store %arg10[%c0_67, %c80], %282 {strides = array<i32>} : memref<2x112xf32, #tpu.memory_space<vmem>>, vector<2x16xf32>,
    %285 = arith.truncf %282 : vector<2x16xf32> to vector<2x16xbf16>
    %cst_68 = arith.constant dense<0.000000e+00> : vector<2x72xf32>
    %286 = tpu.matmul %285, %3, %cst_68 {dimension_numbers = #tpu.dot_dimension_numbers<[1], [0], [0], [1], [0, 0, 1, 1], [], []>} : vector<2x16xbf16>, vector<16x72xbf16>, vector<2x72xf32> -> vector<2x72xf32>
    %287 = vector.extract_strided_slice %286 {offsets = [0, 0], sizes = [2, 8], strides = [1, 1]} : vector<2x72xf32> to vector<2x8xf32>
    %288 = arith.truncf %280 : vector<2x16xf32> to vector<2x16xbf16>
    %cst_69 = arith.constant dense<0.000000e+00> : vector<2x8xf32>
    %289 = tpu.matmul %288, %4, %cst_69 {dimension_numbers = #tpu.dot_dimension_numbers<[1], [0], [0], [1], [0, 0, 1, 1], [], []>} : vector<2x16xbf16>, vector<16x8xbf16>, vector<2x8xf32> -> vector<2x8xf32>
    %290 = arith.addf %287, %289 : vector<2x8xf32>
    %291 = vector.extract_strided_slice %1 {offsets = [0, 48], sizes = [2, 8], strides = [1, 1]} : vector<2x56xf32> to vector<2x8xf32>
    %292 = arith.addf %290, %291 : vector<2x8xf32>
    %293 = vector.extract_strided_slice %286 {offsets = [0, 8], sizes = [2, 64], strides = [1, 1]} : vector<2x72xf32> to vector<2x64xf32>
    %294 = vector.shape_cast %292 : vector<2x8xf32> to vector<2x1x8xf32>
    %295 = vector.broadcast %294 : vector<2x1x8xf32> to vector<2x4x8xf32>
    %296 = arith.addf %0, %295 : vector<2x4x8xf32>
    %297 = math.tanh %296 : vector<2x4x8xf32>
    %298 = arith.mulf %297, %9 : vector<2x4x8xf32>
    %cst_70 = arith.constant dense<0.000000e+00> : vector<2x4xf32>
    %299 = vector.multi_reduction <add>, %298, %cst_70 [2] : vector<2x4x8xf32> to vector<2x4xf32>
    %300 = math.exp %299 : vector<2x4xf32>
    %cst_71 = arith.constant dense<0.000000e+00> : vector<2xf32>
    %301 = vector.multi_reduction <add>, %300, %cst_71 [1] : vector<2x4xf32> to vector<2xf32>
    %302 = vector.shape_cast %301 : vector<2xf32> to vector<2x1xf32>
    %303 = tpu.reciprocal %302 {approx = true} : vector<2x1xf32> -> vector<2x1xf32>
    %304 = vector.broadcast %303 : vector<2x1xf32> to vector<2x4xf32>
    %305 = arith.mulf %300, %304 : vector<2x4xf32>
    %306 = vector.extract_strided_slice %2 {offsets = [0, 24], sizes = [2, 4], strides = [1, 1]} : vector<2x28xf32> to vector<2x4xf32>
    %307 = arith.mulf %305, %306 : vector<2x4xf32>
    %308 = arith.truncf %307 : vector<2x4xf32> to vector<2x4xbf16>
    %cst_72 = arith.constant dense<0.000000e+00> : vector<2x64xf32>
    %309 = tpu.matmul %308, %5, %cst_72 {dimension_numbers = #tpu.dot_dimension_numbers<[1], [0], [0], [1], [0, 0, 1, 1], [], []>} : vector<2x4xbf16>, vector<4x64xbf16>, vector<2x64xf32> -> vector<2x64xf32>
    %310 = arith.addf %309, %293 : vector<2x64xf32>
    %311 = arith.addf %310, %12 : vector<2x64xf32>
    %312 = vector.extract_strided_slice %311 {offsets = [0, 0], sizes = [2, 48], strides = [1, 1]} : vector<2x64xf32> to vector<2x48xf32>
    %313 = arith.negf %312 : vector<2x48xf32>
    %314 = math.exp %313 : vector<2x48xf32>
    %cst_73 = arith.constant 1.000000e+00 : f32
    %315 = vector.broadcast %cst_73 : f32 to vector<2x48xf32>
    %316 = arith.addf %315, %314 : vector<2x48xf32>
    %317 = arith.divf %315, %316 : vector<2x48xf32>
    %318 = vector.extract_strided_slice %311 {offsets = [0, 48], sizes = [2, 16], strides = [1, 1]} : vector<2x64xf32> to vector<2x16xf32>
    %319 = math.tanh %318 : vector<2x16xf32>
    %320 = vector.extract_strided_slice %317 {offsets = [0, 0], sizes = [2, 16], strides = [1, 1]} : vector<2x48xf32> to vector<2x16xf32>
    %321 = vector.extract_strided_slice %317 {offsets = [0, 16], sizes = [2, 16], strides = [1, 1]} : vector<2x48xf32> to vector<2x16xf32>
    %322 = vector.extract_strided_slice %317 {offsets = [0, 32], sizes = [2, 16], strides = [1, 1]} : vector<2x48xf32> to vector<2x16xf32>
    %323 = arith.mulf %321, %280 : vector<2x16xf32>
    %324 = arith.mulf %320, %319 : vector<2x16xf32>
    %325 = arith.addf %323, %324 : vector<2x16xf32>
    %326 = math.tanh %325 : vector<2x16xf32>
    %327 = arith.mulf %322, %326 : vector<2x16xf32>
    %c0_74 = arith.constant 0 : index
    %c24 = arith.constant 24 : index
    %328 = vector.load %arg9[%c0_74, %c24] : memref<2x28xf32, #tpu.memory_space<vmem>>, vector<2x4xf32>
    tpu.vector_store %arg9[%c0_74, %c24], %307 {strides = array<i32>} : memref<2x28xf32, #tpu.memory_space<vmem>>, vector<2x4xf32>,
    %c0_75 = arith.constant 0 : index
    %c96 = arith.constant 96 : index
    %329 = vector.load %arg10[%c0_75, %c96] : memref<2x112xf32, #tpu.memory_space<vmem>>, vector<2x16xf32>
    tpu.vector_store %arg10[%c0_75, %c96], %327 {strides = array<i32>} : memref<2x112xf32, #tpu.memory_space<vmem>>, vector<2x16xf32>,
    return
  }
  func.func @transform_0(%arg0: i32) -> (i32, i32, i32) {
    %c0_i32 = arith.constant 0 : i32
    %c0_i32_0 = arith.constant 0 : i32
    %c0_i32_1 = arith.constant 0 : i32
    %c0_i32_2 = arith.constant 0 : i32
    return %c0_i32, %c0_i32_0, %c0_i32_1 : i32, i32, i32
  }
  func.func @transform_1(%arg0: i32) -> (i32, i32) {
    %c0_i32 = arith.constant 0 : i32
    %c0_i32_0 = arith.constant 0 : i32
    %c0_i32_1 = arith.constant 0 : i32
    return %c0_i32, %c0_i32_0 : i32, i32
  }
  func.func @transform_2(%arg0: i32) -> (i32, i32) {
    %c0_i32 = arith.constant 0 : i32
    %c0_i32_0 = arith.constant 0 : i32
    %c0_i32_1 = arith.constant 0 : i32
    return %c0_i32, %c0_i32_0 : i32, i32
  }
  func.func @transform_3(%arg0: i32) -> (i32, i32) {
    %c0_i32 = arith.constant 0 : i32
    %c0_i32_0 = arith.constant 0 : i32
    %c0_i32_1 = arith.constant 0 : i32
    return %c0_i32, %c0_i32_0 : i32, i32
  }
  func.func @transform_4(%arg0: i32) -> (i32, i32) {
    %c0_i32 = arith.constant 0 : i32
    %c0_i32_0 = arith.constant 0 : i32
    %c0_i32_1 = arith.constant 0 : i32
    return %c0_i32, %c0_i32_0 : i32, i32
  }
  func.func @transform_5(%arg0: i32) -> (i32, i32) {
    %c0_i32 = arith.constant 0 : i32
    %c0_i32_0 = arith.constant 0 : i32
    %c0_i32_1 = arith.constant 0 : i32
    return %c0_i32, %c0_i32_0 : i32, i32
  }
  func.func @transform_6(%arg0: i32) -> (i32, i32) {
    %c0_i32 = arith.constant 0 : i32
    %c0_i32_0 = arith.constant 0 : i32
    %c0_i32_1 = arith.constant 0 : i32
    return %c0_i32, %c0_i32_0 : i32, i32
  }
  func.func @transform_7(%arg0: i32) -> (i32, i32) {
    %c0_i32 = arith.constant 0 : i32
    %c0_i32_0 = arith.constant 0 : i32
    %c0_i32_1 = arith.constant 0 : i32
    return %c0_i32, %c0_i32_0 : i32, i32
  }
  func.func @transform_8(%arg0: i32) -> (i32, i32) {
    %c0_i32 = arith.constant 0 : i32
    %c0_i32_0 = arith.constant 0 : i32
    %c0_i32_1 = arith.constant 0 : i32
    return %c0_i32, %c0_i32_0 : i32, i32
  }
  func.func @transform_9(%arg0: i32) -> (i32, i32) {
    %c0_i32 = arith.constant 0 : i32
    %c0_i32_0 = arith.constant 0 : i32
    %c0_i32_1 = arith.constant 0 : i32
    return %c0_i32, %c0_i32_0 : i32, i32
  }
}

</mosaic_0001>

<llo_original>
// kernel: second_stage_pallas.1
$region0: #{second_stage_pallas.1}
  #allocation0 [shape = 'u32[]', space=smem, size = 0x4, offset = 0x4, fixed_abs, tag = 'smem constant byte address 0x4 - core index']
  #allocation1 [shape = 'u32[144,128]{1,0:T(1,128)}', space=vmem, size = 0x12000, scoped, tag = 'internal scratch']
  %s0 = inlined_call_operand.vmem [shape: f32[2,4,8], index: 0, kind: input, shape index: {}]
  %s1 = inlined_call_operand.vmem [shape: f32[2,56], index: 1, kind: input, shape index: {}]
  %s2 = inlined_call_operand.vmem [shape: f32[2,28], index: 2, kind: input, shape index: {}]
  %s3 = inlined_call_operand.vmem [shape: bf16[16,72], index: 3, kind: input, shape index: {}]
  %s4 = inlined_call_operand.vmem [shape: bf16[16,8], index: 4, kind: input, shape index: {}]
  %s5 = inlined_call_operand.vmem [shape: f32[1,8], index: 5, kind: input, shape index: {}]
  %s6 = inlined_call_operand.vmem [shape: bf16[4,64], index: 6, kind: input, shape index: {}]
  %s7 = inlined_call_operand.vmem [shape: f32[1,64], index: 7, kind: input, shape index: {}]
  %s8 = inlined_call_operand.vmem [shape: f32[2,28], index: 8, kind: output, shape index: {0}]
  %s9 = inlined_call_operand.vmem [shape: f32[2,112], index: 9, kind: output, shape index: {1}]
  %10 = xla_tuple %s8, %s9
  %s11 = sld [smem:[#allocation0]]
  $region50: #{second_stage_pallas.1} parent=0
    _
  %s13 = ssub.s32 1, %s11
  %s14 = scalar_select 0, %s13, %s11
  // Predicated region
  $region2: #{second_stage_pallas.1} parent=0 // pred_check
    _
  $region3: #{second_stage_pallas.1} parent=0 // pred_check_branch
    %16 = sbr.rel (0) target = $region5
  $region4: #{second_stage_pallas.1} parent=0 // pred_region
    _
  $region5: #{second_stage_pallas.1} parent=0 // pred_fallthru
    _
  // Predicated region
  $region6: #{second_stage_pallas.1} parent=0 // pred_check
    _
  $region7: #{second_stage_pallas.1} parent=0 // pred_check_branch
    %18 = sbr.rel (0) target = $region9
  $region8: #{second_stage_pallas.1} parent=0 // pred_region
    _
  $region9: #{second_stage_pallas.1} parent=0 // pred_fallthru
    _
  // Predicated region
  $region10: #{second_stage_pallas.1} parent=0 // pred_check
    _
  $region11: #{second_stage_pallas.1} parent=0 // pred_check_branch
    %20 = sbr.rel (0) target = $region13
  $region12: #{second_stage_pallas.1} parent=0 // pred_region
    _
  $region13: #{second_stage_pallas.1} parent=0 // pred_fallthru
    _
  // Predicated region
  $region14: #{second_stage_pallas.1} parent=0 // pred_check
    _
  $region15: #{second_stage_pallas.1} parent=0 // pred_check_branch
    %22 = sbr.rel (0) target = $region17
  $region16: #{second_stage_pallas.1} parent=0 // pred_region
    _
  $region17: #{second_stage_pallas.1} parent=0 // pred_fallthru
    _
  // Predicated region
  $region18: #{second_stage_pallas.1} parent=0 // pred_check
    _
  $region19: #{second_stage_pallas.1} parent=0 // pred_check_branch
    %24 = sbr.rel (0) target = $region21
  $region20: #{second_stage_pallas.1} parent=0 // pred_region
    _
  $region21: #{second_stage_pallas.1} parent=0 // pred_fallthru
    _
  // Predicated region
  $region22: #{second_stage_pallas.1} parent=0 // pred_check
    _
  $region23: #{second_stage_pallas.1} parent=0 // pred_check_branch
    %26 = sbr.rel (0) target = $region25
  $region24: #{second_stage_pallas.1} parent=0 // pred_region
    _
  $region25: #{second_stage_pallas.1} parent=0 // pred_fallthru
    _
  // Predicated region
  $region26: #{second_stage_pallas.1} parent=0 // pred_check
    _
  $region27: #{second_stage_pallas.1} parent=0 // pred_check_branch
    %28 = sbr.rel (0) target = $region29
  $region28: #{second_stage_pallas.1} parent=0 // pred_region
    _
  $region29: #{second_stage_pallas.1} parent=0 // pred_fallthru
    _
  // Predicated region
  $region30: #{second_stage_pallas.1} parent=0 // pred_check
    _
  $region31: #{second_stage_pallas.1} parent=0 // pred_check_branch
    %30 = sbr.rel (0) target = $region33
  $region32: #{second_stage_pallas.1} parent=0 // pred_region
    _
  $region33: #{second_stage_pallas.1} parent=0 // pred_fallthru
    _
  %v32 = vld [vmem:[%s0] sm:$0xf]
  %v33 = vld [vmem:[%s0 + $0x4] sm:$0xf]
  %v34 = vld [vmem:[%s1] sm:$0x3]
  %v35 = vld [vmem:[%s2] sm:$0x3]
  %v36 = vld [vmem:[%s3] sm:$0xf]
  %v37 = vld [vmem:[%s3 + $0x4] sm:$0xf]
  %v38 = vld [vmem:[%s4] sm:$0xf]
  %v39 = vld [vmem:[%s4 + $0x4] sm:$0xf]
  %v40 = vld [vmem:[%s6] sm:$0x3]
  %v41 = vld [vmem:[%s5] sm:$0x1]
  %v43 = vlaneseq
  %v44 = vshrl.u32 %v43, 7
  %v45 = vsub.s32 0, %v44
  %v46 = vrot.slane %v41, %v45
  %v48 = vld [vmem:[%s7] sm:$0x1]
  %v50 = vlaneseq
  %v51 = vshrl.u32 %v50, 7
  %v52 = vsub.s32 0, %v51
  %v53 = vrot.slane %v48, %v52
  %v57 = vunpack.c.l.b16 %v36
  %v58 = vunpack.c.l.b16 %v37
  %v59 = vpack.c.b16 %v58, %v57
  %vm61 = vcmask 130048
  %v63 = vsel %vm61, 0, 0
  %65 = vmatprep.subr.bf16.mxu0 0
  %66 = vmatpush1.bf16.msra.mxu0 0
  %67 = vmatprep.subr.bf16.mxu0 0
  %68 = vmatpush1.bf16.msra.mxu0 0
  %69 = vmatprep.subr.bf16.mxu0 0
  %70 = vmatpush1.bf16.msra.mxu0 0
  %71 = vmatprep.subr.bf16.mxu0 0
  %72 = vmatpush1.bf16.msra.mxu0 0
  %73 = vmatprep.subr.bf16.mxu0 0
  %74 = vmatpush1.bf16.msra.mxu0 0
  %75 = vmatprep.subr.bf16.mxu0 0
  %76 = vmatpush1.bf16.msra.mxu0 0
  %77 = vmatprep.subr.bf16.mxu0 0
  %78 = vmatpush1.bf16.msra.mxu0 0
  %79 = vmatprep.subr.bf16.mxu0 0
  %80 = vmatpush1.bf16.msra.mxu0 %v59
  %81 = vmatprep.subr.bf16.mxu0 0
  %82 = vmatpush2.bf16.msra.mxu0 0
  %83 = vmatprep.subr.bf16.mxu0 0
  %84 = vmatpush2.bf16.msra.mxu0 0
  %85 = vmatprep.subr.bf16.mxu0 0
  %86 = vmatpush2.bf16.msra.mxu0 0
  %87 = vmatprep.subr.bf16.mxu0 0
  %88 = vmatpush2.bf16.msra.mxu0 0
  %89 = vmatprep.subr.bf16.mxu0 0
  %90 = vmatpush2.bf16.msra.mxu0 0
  %91 = vmatprep.subr.bf16.mxu0 0
  %92 = vmatpush2.bf16.msra.mxu0 0
  %93 = vmatprep.subr.bf16.mxu0 0
  %94 = vmatpush2.bf16.msra.mxu0 0
  %95 = vmatprep.subr.bf16.mxu0 0
  %96 = vmatpush2.bf16.msra.mxu0 0
  %97 = vmatprep.mubr.bf16.mxu0 0
  %98 = vmatmul.mubr.bf16.gmra.mxu0 %v63
  %v99 = vpop.f32.mrf.mxu0
  %v100 = vadd.f32 0.0, %v99
  %v101 = vpop.f32.mrf.mxu0
  %v102 = vpop.f32.mrf.mxu0
  %v103 = vpop.f32.mrf.mxu0
  %104 = vdwg.mxu0
  %v107 = vunpack.c.l.b16 %v38
  %v108 = vunpack.c.l.b16 %v39
  %v109 = vpack.c.b16 %v108, %v107
  %111 = vmatprep.subr.bf16.mxu0 0
  %112 = vmatpush1.bf16.msra.mxu0 0
  %113 = vmatprep.subr.bf16.mxu0 0
  %114 = vmatpush1.bf16.msra.mxu0 0
  %115 = vmatprep.subr.bf16.mxu0 0
  %116 = vmatpush1.bf16.msra.mxu0 0
  %117 = vmatprep.subr.bf16.mxu0 0
  %118 = vmatpush1.bf16.msra.mxu0 0
  %119 = vmatprep.subr.bf16.mxu0 0
  %120 = vmatpush1.bf16.msra.mxu0 0
  %121 = vmatprep.subr.bf16.mxu0 0
  %122 = vmatpush1.bf16.msra.mxu0 0
  %123 = vmatprep.subr.bf16.mxu0 0
  %124 = vmatpush1.bf16.msra.mxu0 0
  %125 = vmatprep.subr.bf16.mxu0 0
  %126 = vmatpush1.bf16.msra.mxu0 %v109
  %127 = vmatprep.subr.bf16.mxu0 0
  %128 = vmatpush2.bf16.msra.mxu0 0
  %129 = vmatprep.subr.bf16.mxu0 0
  %130 = vmatpush2.bf16.msra.mxu0 0
  %131 = vmatprep.subr.bf16.mxu0 0
  %132 = vmatpush2.bf16.msra.mxu0 0
  %133 = vmatprep.subr.bf16.mxu0 0
  %134 = vmatpush2.bf16.msra.mxu0 0
  %135 = vmatprep.subr.bf16.mxu0 0
  %136 = vmatpush2.bf16.msra.mxu0 0
  %137 = vmatprep.subr.bf16.mxu0 0
  %138 = vmatpush2.bf16.msra.mxu0 0
  %139 = vmatprep.subr.bf16.mxu0 0
  %140 = vmatpush2.bf16.msra.mxu0 0
  %141 = vmatprep.subr.bf16.mxu0 0
  %142 = vmatpush2.bf16.msra.mxu0 0
  %143 = vmatprep.mubr.bf16.mxu0 0
  %144 = vmatmul.mubr.bf16.gmra.mxu0 %v63
  %v145 = vpop.f32.mrf.mxu0
  %v146 = vadd.f32 0.0, %v145
  %v147 = vpop.f32.mrf.mxu0
  %v148 = vpop.f32.mrf.mxu0
  %v149 = vpop.f32.mrf.mxu0
  %150 = vdwg.mxu0
  %v151 = vadd.f32 %v100, %v146
  %v152 = vadd.f32 %v151, %v34
  %v155 = vunpack.c.l.s4 1966171168
  %v156 = vunpack.c.0.s8 %v155
  %v157 = vlaneseq
  %v158 = vshrl.u32 %v157, 7
  %v159 = vsub.s32 %v156, %v158
  %v160 = vrot.slane %v152, %v159
  %v161 = vcombine.high %v160, %v160
  %v163 = vunpack.c.l.s4 1966171168
  %v164 = vunpack.c.0.s8 %v163
  %v165 = vlaneseq
  %v166 = vshrl.u32 %v165, 7
  %v167 = vsub.s32 %v164, %v166
  %v168 = vrot.slane %v160, %v167
  %v170 = vunpack.c.l.s4 1966171168
  %v171 = vunpack.c.0.s8 %v170
  %v172 = vlaneseq
  %v173 = vshrl.u32 %v172, 7
  %v174 = vsub.s32 %v171, %v173
  %v175 = vrot.slane %v161, %v174
  %v176 = vlaneseq
  %v177 = vshrl.u32 %v176, 7
  %v178 = vsub.s32 0, %v177
  %v179 = vrot.slane %v168, %v178
  %v180 = vlaneseq
  %v181 = vshrl.u32 %v180, 7
  %v182 = vsub.s32 0, %v181
  %v183 = vrot.slane %v175, %v182
  %v186 = vadd.f32 %v32, %v179
  %v187 = vadd.f32 %v33, %v183
  %v188 = vtanh.pop %v186
  %v189 = vtanh.pop %v187
  %v190 = vmul.f32 %v188, %v46
  %v191 = vmul.f32 %v189, %v46
  %vm192 = vcmask 60416
  %v193 = vsel %vm192, %v190, 0.0
  %194 = vadd.xlane.f32.xlu0 %v193
  %v195 = vpop.xlane.xlu0 %194
  %v196 = vsel %vm192, %v191, 0.0
  %197 = vadd.xlane.f32.xlu0 %v196
  %v198 = vpop.xlane.xlu0 %197
  %v199 = vmul.f32 %v195, 1.442695
  %v200 = vpow.pop %v199
  %v201 = vmul.f32 %v198, 1.442695
  %v202 = vpow.pop %v201
  %v205 = vlaneseq
  %v206 = vand.u32 %v205, 127
  %v207 = vlaneseq
  %v208 = vshrl.u32 %v207, 7
  %v209 = vsub.s32 %v206, %v208
  %v210 = vrot.slane %v200, %v209
  %v211 = vlaneseq
  %v212 = vshrl.u32 %v211, 7
  %v213 = vsub.s32 %v206, %v212
  %v214 = vrot.slane %v202, %v213
  %vm215 = vcmask 1041409
  %v216 = vsel %vm215, %v214, %v210
  %vm218 = vcmask 25600
  %v219 = vsel %vm218, %v216, 0.0
  %220 = vadd.xlane.f32.xlu0 %v219
  %v221 = vpop.xlane.xlu0 %220
  %v222 = vrcp.pop %v221
  %v224 = vlaneseq
  %v225 = vshrl.u32 %v224, 7
  %v226 = vsub.s32 0, %v225
  %v227 = vrot.slane %v222, %v226
  %v228 = vlaneseq
  %v229 = vshrl.u32 %v228, 7
  %v230 = vsub.s32 1, %v229
  %v231 = vrot.slane %v222, %v230
  %v234 = vmul.f32 %v200, %v227
  %v235 = vmul.f32 %v202, %v231
  %v237 = vlaneseq
  %v238 = vshrl.u32 %v237, 7
  %v239 = vsub.s32 0, %v238
  %v240 = vrot.slane %v35, %v239
  %242 = vbcast.lane.b32.xlu0 %v240, 256
  %v243 = vpop.permute.xlu0 %242
  %v244 = vlaneseq
  %v245 = vshrl.u32 %v244, 7
  %v246 = vsub.s32 1, %v245
  %v247 = vrot.slane %v35, %v246
  %249 = vbcast.lane.b32.xlu0 %v247, 256
  %v250 = vpop.permute.xlu0 %249
  %v253 = vmul.f32 %v234, %v243
  %v254 = vmul.f32 %v235, %v250
  %v255 = vpack.c.bf16 %v253, %v253
  %v256 = vpack.c.bf16 %v254, %v254
  %v259 = vunpack.c.l.b16 %v255
  %v260 = vunpack.c.l.b16 %v256
  %261 = vset.pattern.permute.xlu0 0
  %262 = vperm.xlu0 %261, %v259
  %v263 = vpop.permute.xlu0 %262
  %264 = vset.pattern.permute.xlu0 0
  %265 = vperm.xlu0 %264, %v260
  %v266 = vpop.permute.xlu0 %265
  %v267 = vlaneseq
  %v268 = vshrl.u32 %v267, 7
  %v269 = vsub.s32 %v206, %v268
  %v270 = vrot.slane %v263, %v269
  %v271 = vlaneseq
  %v272 = vshrl.u32 %v271, 7
  %v273 = vsub.s32 %v206, %v272
  %v274 = vrot.slane %v266, %v273
  %v275 = vsel %vm215, %v274, %v270
  %v276 = vpack.c.b16 %v275, %v275
  %278 = vrot.lane.b32.xlu0 %v100, 120
  %v279 = vpop.permute.xlu0 %278
  %vm281 = vcmask 31744
  %v283 = vsel %vm281, %v276, 0
  %vm285 = vcmask 1041408
  %v287 = vsel %vm285, %v40, 0
  %289 = vmatprep.subr.bf16.mxu0 0
  %290 = vmatpush1.bf16.msra.mxu0 0
  %291 = vmatprep.subr.bf16.mxu0 0
  %292 = vmatpush1.bf16.msra.mxu0 0
  %293 = vmatprep.subr.bf16.mxu0 0
  %294 = vmatpush1.bf16.msra.mxu0 0
  %295 = vmatprep.subr.bf16.mxu0 0
  %296 = vmatpush1.bf16.msra.mxu0 0
  %297 = vmatprep.subr.bf16.mxu0 0
  %298 = vmatpush1.bf16.msra.mxu0 0
  %299 = vmatprep.subr.bf16.mxu0 0
  %300 = vmatpush1.bf16.msra.mxu0 0
  %301 = vmatprep.subr.bf16.mxu0 0
  %302 = vmatpush1.bf16.msra.mxu0 0
  %303 = vmatprep.subr.bf16.mxu0 0
  %304 = vmatpush1.bf16.msra.mxu0 %v287
  %305 = vmatprep.subr.bf16.mxu0 0
  %306 = vmatpush2.bf16.msra.mxu0 0
  %307 = vmatprep.subr.bf16.mxu0 0
  %308 = vmatpush2.bf16.msra.mxu0 0
  %309 = vmatprep.subr.bf16.mxu0 0
  %310 = vmatpush2.bf16.msra.mxu0 0
  %311 = vmatprep.subr.bf16.mxu0 0
  %312 = vmatpush2.bf16.msra.mxu0 0
  %313 = vmatprep.subr.bf16.mxu0 0
  %314 = vmatpush2.bf16.msra.mxu0 0
  %315 = vmatprep.subr.bf16.mxu0 0
  %316 = vmatpush2.bf16.msra.mxu0 0
  %317 = vmatprep.subr.bf16.mxu0 0
  %318 = vmatpush2.bf16.msra.mxu0 0
  %319 = vmatprep.subr.bf16.mxu0 0
  %320 = vmatpush2.bf16.msra.mxu0 0
  %321 = vmatprep.mubr.bf16.mxu0 0
  %322 = vmatmul.mubr.bf16.gmra.mxu0 %v283
  %v323 = vpop.f32.mrf.mxu0
  %v324 = vadd.f32 %v279, %v323
  %v325 = vpop.f32.mrf.mxu0
  %v326 = vpop.f32.mrf.mxu0
  %v327 = vpop.f32.mrf.mxu0
  %328 = vdwg.mxu0
  %v329 = vadd.f32 %v324, %v53
  %v330 = vxor.u32 %v329, 2147483648
  %v331 = vmul.f32 %v330, 1.442695
  %v332 = vpow.pop %v331
  %v333 = vadd.f32 %v332, 1.0
  %v334 = vrcp.pop %v333
  %v335 = vmul.f32 1.0, %v334
  %v336 = vtanh.pop %v329
  %v337 = vmul.f32 %v335, 0.0
  %339 = vrot.lane.b32.xlu0 %v336, 80
  %v340 = vpop.permute.xlu0 %339
  %v342 = vmul.f32 %v335, %v340
  %344 = vrot.lane.b32.xlu0 %v342, 16
  %v345 = vpop.permute.xlu0 %344
  %v347 = vadd.f32 %v337, %v345
  %v348 = vtanh.pop %v347
  %350 = vrot.lane.b32.xlu0 %v348, 16
  %v351 = vpop.permute.xlu0 %350
  %v353 = vmul.f32 %v335, %v351
  %356 = vset.pattern.permute.xlu0 0
  %357 = vperm.xlu0 %356, %v253
  %v358 = vpop.permute.xlu0 %357
  %359 = vset.pattern.permute.xlu0 0
  %360 = vperm.xlu0 %359, %v254
  %v361 = vpop.permute.xlu0 %360
  %v362 = vlaneseq
  %v363 = vshrl.u32 %v362, 7
  %v364 = vsub.s32 %v206, %v363
  %v365 = vrot.slane %v358, %v364
  %v366 = vlaneseq
  %v367 = vshrl.u32 %v366, 7
  %v368 = vsub.s32 %v206, %v367
  %v369 = vrot.slane %v361, %v368
  %v370 = vsel %vm215, %v369, %v365
  %372 = vst.msk [vmem:[%s8] sm:$0x3] %vm218, %v370
  %374 = vrot.lane.b32.xlu0 %v353, 96
  %v375 = vpop.permute.xlu0 %374
  %vm377 = vcmask 123904
  %378 = vst.msk [vmem:[%s9] sm:$0x3] %vm377, %v375
  %v379 = vpack.c.bf16 %v353, %v353
  %381 = vrot.lane.b32.xlu0 %v379, 96
  %v382 = vpop.permute.xlu0 %381
  %v384 = vsel %vm61, %v382, 0
  %386 = vmatprep.subr.bf16.mxu0 0
  %387 = vmatpush1.bf16.msra.mxu0 0
  %388 = vmatprep.subr.bf16.mxu0 0
  %389 = vmatpush1.bf16.msra.mxu0 0
  %390 = vmatprep.subr.bf16.mxu0 0
  %391 = vmatpush1.bf16.msra.mxu0 0
  %392 = vmatprep.subr.bf16.mxu0 0
  %393 = vmatpush1.bf16.msra.mxu0 0
  %394 = vmatprep.subr.bf16.mxu0 0
  %395 = vmatpush1.bf16.msra.mxu0 0
  %396 = vmatprep.subr.bf16.mxu0 0
  %397 = vmatpush1.bf16.msra.mxu0 0
  %398 = vmatprep.subr.bf16.mxu0 0
  %399 = vmatpush1.bf16.msra.mxu0 0
  %400 = vmatprep.subr.bf16.mxu0 0
  %401 = vmatpush1.bf16.msra.mxu0 %v59
  %402 = vmatprep.subr.bf16.mxu0 0
  %403 = vmatpush2.bf16.msra.mxu0 0
  %404 = vmatprep.subr.bf16.mxu0 0
  %405 = vmatpush2.bf16.msra.mxu0 0
  %406 = vmatprep.subr.bf16.mxu0 0
  %407 = vmatpush2.bf16.msra.mxu0 0
  %408 = vmatprep.subr.bf16.mxu0 0
  %409 = vmatpush2.bf16.msra.mxu0 0
  %410 = vmatprep.subr.bf16.mxu0 0
  %411 = vmatpush2.bf16.msra.mxu0 0
  %412 = vmatprep.subr.bf16.mxu0 0
  %413 = vmatpush2.bf16.msra.mxu0 0
  %414 = vmatprep.subr.bf16.mxu0 0
  %415 = vmatpush2.bf16.msra.mxu0 0
  %416 = vmatprep.subr.bf16.mxu0 0
  %417 = vmatpush2.bf16.msra.mxu0 0
  %418 = vmatprep.mubr.bf16.mxu0 0
  %419 = vmatmul.mubr.bf16.gmra.mxu0 %v384
  %v420 = vpop.f32.mrf.mxu0
  %v421 = vadd.f32 0.0, %v420
  %v422 = vpop.f32.mrf.mxu0
  %v423 = vpop.f32.mrf.mxu0
  %v424 = vpop.f32.mrf.mxu0
  %425 = vdwg.mxu0
  %v426 = vpack.c.bf16 %v347, %v347
  %428 = vrot.lane.b32.xlu0 %v426, 112
  %v429 = vpop.permute.xlu0 %428
  %v431 = vsel %vm61, %v429, 0
  %433 = vmatprep.subr.bf16.mxu0 0
  %434 = vmatpush1.bf16.msra.mxu0 0
  %435 = vmatprep.subr.bf16.mxu0 0
  %436 = vmatpush1.bf16.msra.mxu0 0
  %437 = vmatprep.subr.bf16.mxu0 0
  %438 = vmatpush1.bf16.msra.mxu0 0
  %439 = vmatprep.subr.bf16.mxu0 0
  %440 = vmatpush1.bf16.msra.mxu0 0
  %441 = vmatprep.subr.bf16.mxu0 0
  %442 = vmatpush1.bf16.msra.mxu0 0
  %443 = vmatprep.subr.bf16.mxu0 0
  %444 = vmatpush1.bf16.msra.mxu0 0
  %445 = vmatprep.subr.bf16.mxu0 0
  %446 = vmatpush1.bf16.msra.mxu0 0
  %447 = vmatprep.subr.bf16.mxu0 0
  %448 = vmatpush1.bf16.msra.mxu0 %v109
  %449 = vmatprep.subr.bf16.mxu0 0
  %450 = vmatpush2.bf16.msra.mxu0 0
  %451 = vmatprep.subr.bf16.mxu0 0
  %452 = vmatpush2.bf16.msra.mxu0 0
  %453 = vmatprep.subr.bf16.mxu0 0
  %454 = vmatpush2.bf16.msra.mxu0 0
  %455 = vmatprep.subr.bf16.mxu0 0
  %456 = vmatpush2.bf16.msra.mxu0 0
  %457 = vmatprep.subr.bf16.mxu0 0
  %458 = vmatpush2.bf16.msra.mxu0 0
  %459 = vmatprep.subr.bf16.mxu0 0
  %460 = vmatpush2.bf16.msra.mxu0 0
  %461 = vmatprep.subr.bf16.mxu0 0
  %462 = vmatpush2.bf16.msra.mxu0 0
  %463 = vmatprep.subr.bf16.mxu0 0
  %464 = vmatpush2.bf16.msra.mxu0 0
  %465 = vmatprep.mubr.bf16.mxu0 0
  %466 = vmatmul.mubr.bf16.gmra.mxu0 %v431
  %v467 = vpop.f32.mrf.mxu0
  %v468 = vadd.f32 0.0, %v467
  %v469 = vpop.f32.mrf.mxu0
  %v470 = vpop.f32.mrf.mxu0
  %v471 = vpop.f32.mrf.mxu0
  %472 = vdwg.mxu0
  %v473 = vadd.f32 %v421, %v468
  %475 = vrot.lane.b32.xlu0 %v34, 120
  %v476 = vpop.permute.xlu0 %475
  %v478 = vadd.f32 %v473, %v476
  %v481 = vunpack.c.l.s4 1966171168
  %v482 = vunpack.c.0.s8 %v481
  %v483 = vlaneseq
  %v484 = vshrl.u32 %v483, 7
  %v485 = vsub.s32 %v482, %v484
  %v486 = vrot.slane %v478, %v485
  %v487 = vcombine.high %v486, %v486
  %v489 = vunpack.c.l.s4 1966171168
  %v490 = vunpack.c.0.s8 %v489
  %v491 = vlaneseq
  %v492 = vshrl.u32 %v491, 7
  %v493 = vsub.s32 %v490, %v492
  %v494 = vrot.slane %v486, %v493
  %v496 = vunpack.c.l.s4 1966171168
  %v497 = vunpack.c.0.s8 %v496
  %v498 = vlaneseq
  %v499 = vshrl.u32 %v498, 7
  %v500 = vsub.s32 %v497, %v499
  %v501 = vrot.slane %v487, %v500
  %v502 = vlaneseq
  %v503 = vshrl.u32 %v502, 7
  %v504 = vsub.s32 0, %v503
  %v505 = vrot.slane %v494, %v504
  %v506 = vlaneseq
  %v507 = vshrl.u32 %v506, 7
  %v508 = vsub.s32 0, %v507
  %v509 = vrot.slane %v501, %v508
  %v512 = vadd.f32 %v32, %v505
  %v513 = vadd.f32 %v33, %v509
  %v514 = vtanh.pop %v512
  %v515 = vtanh.pop %v513
  %v516 = vmul.f32 %v514, %v46
  %v517 = vmul.f32 %v515, %v46
  %v518 = vsel %vm192, %v516, 0.0
  %519 = vadd.xlane.f32.xlu0 %v518
  %v520 = vpop.xlane.xlu0 %519
  %v521 = vsel %vm192, %v517, 0.0
  %522 = vadd.xlane.f32.xlu0 %v521
  %v523 = vpop.xlane.xlu0 %522
  %v524 = vmul.f32 %v520, 1.442695
  %v525 = vpow.pop %v524
  %v526 = vmul.f32 %v523, 1.442695
  %v527 = vpow.pop %v526
  %v530 = vlaneseq
  %v531 = vshrl.u32 %v530, 7
  %v532 = vsub.s32 %v206, %v531
  %v533 = vrot.slane %v525, %v532
  %v534 = vlaneseq
  %v535 = vshrl.u32 %v534, 7
  %v536 = vsub.s32 %v206, %v535
  %v537 = vrot.slane %v527, %v536
  %v538 = vsel %vm215, %v537, %v533
  %v540 = vsel %vm218, %v538, 0.0
  %541 = vadd.xlane.f32.xlu0 %v540
  %v542 = vpop.xlane.xlu0 %541
  %v543 = vrcp.pop %v542
  %v545 = vlaneseq
  %v546 = vshrl.u32 %v545, 7
  %v547 = vsub.s32 0, %v546
  %v548 = vrot.slane %v543, %v547
  %v549 = vlaneseq
  %v550 = vshrl.u32 %v549, 7
  %v551 = vsub.s32 1, %v550
  %v552 = vrot.slane %v543, %v551
  %v555 = vmul.f32 %v525, %v548
  %v556 = vmul.f32 %v527, %v552
  %s558 = sor.u32 256, 4
  %559 = vbcast.lane.b32.xlu0 %v240, %s558
  %v560 = vpop.permute.xlu0 %559
  %s562 = sor.u32 256, 4
  %563 = vbcast.lane.b32.xlu0 %v247, %s562
  %v564 = vpop.permute.xlu0 %563
  %v567 = vmul.f32 %v555, %v560
  %v568 = vmul.f32 %v556, %v564
  %v569 = vpack.c.bf16 %v567, %v567
  %v570 = vpack.c.bf16 %v568, %v568
  %v573 = vunpack.c.l.b16 %v569
  %v574 = vunpack.c.l.b16 %v570
  %575 = vset.pattern.permute.xlu0 0
  %576 = vperm.xlu0 %575, %v573
  %v577 = vpop.permute.xlu0 %576
  %578 = vset.pattern.permute.xlu0 0
  %579 = vperm.xlu0 %578, %v574
  %v580 = vpop.permute.xlu0 %579
  %v581 = vlaneseq
  %v582 = vshrl.u32 %v581, 7
  %v583 = vsub.s32 %v206, %v582
  %v584 = vrot.slane %v577, %v583
  %v585 = vlaneseq
  %v586 = vshrl.u32 %v585, 7
  %v587 = vsub.s32 %v206, %v586
  %v588 = vrot.slane %v580, %v587
  %v589 = vsel %vm215, %v588, %v584
  %v590 = vpack.c.b16 %v589, %v589
  %592 = vrot.lane.b32.xlu0 %v421, 120
  %v593 = vpop.permute.xlu0 %592
  %v596 = vsel %vm281, %v590, 0
  %598 = vmatprep.subr.bf16.mxu0 0
  %599 = vmatpush1.bf16.msra.mxu0 0
  %600 = vmatprep.subr.bf16.mxu0 0
  %601 = vmatpush1.bf16.msra.mxu0 0
  %602 = vmatprep.subr.bf16.mxu0 0
  %603 = vmatpush1.bf16.msra.mxu0 0
  %604 = vmatprep.subr.bf16.mxu0 0
  %605 = vmatpush1.bf16.msra.mxu0 0
  %606 = vmatprep.subr.bf16.mxu0 0
  %607 = vmatpush1.bf16.msra.mxu0 0
  %608 = vmatprep.subr.bf16.mxu0 0
  %609 = vmatpush1.bf16.msra.mxu0 0
  %610 = vmatprep.subr.bf16.mxu0 0
  %611 = vmatpush1.bf16.msra.mxu0 0
  %612 = vmatprep.subr.bf16.mxu0 0
  %613 = vmatpush1.bf16.msra.mxu0 %v287
  %614 = vmatprep.subr.bf16.mxu0 0
  %615 = vmatpush2.bf16.msra.mxu0 0
  %616 = vmatprep.subr.bf16.mxu0 0
  %617 = vmatpush2.bf16.msra.mxu0 0
  %618 = vmatprep.subr.bf16.mxu0 0
  %619 = vmatpush2.bf16.msra.mxu0 0
  %620 = vmatprep.subr.bf16.mxu0 0
  %621 = vmatpush2.bf16.msra.mxu0 0
  %622 = vmatprep.subr.bf16.mxu0 0
  %623 = vmatpush2.bf16.msra.mxu0 0
  %624 = vmatprep.subr.bf16.mxu0 0
  %625 = vmatpush2.bf16.msra.mxu0 0
  %626 = vmatprep.subr.bf16.mxu0 0
  %627 = vmatpush2.bf16.msra.mxu0 0
  %628 = vmatprep.subr.bf16.mxu0 0
  %629 = vmatpush2.bf16.msra.mxu0 0
  %630 = vmatprep.mubr.bf16.mxu0 0
  %631 = vmatmul.mubr.bf16.gmra.mxu0 %v596
  %v632 = vpop.f32.mrf.mxu0
  %v633 = vadd.f32 %v593, %v632
  %v634 = vpop.f32.mrf.mxu0
  %v635 = vpop.f32.mrf.mxu0
  %v636 = vpop.f32.mrf.mxu0
  %637 = vdwg.mxu0
  %v638 = vadd.f32 %v633, %v53
  %v639 = vxor.u32 %v638, 2147483648
  %v640 = vmul.f32 %v639, 1.442695
  %v641 = vpow.pop %v640
  %v642 = vadd.f32 %v641, 1.0
  %v643 = vrcp.pop %v642
  %v644 = vmul.f32 1.0, %v643
  %v645 = vtanh.pop %v638
  %v646 = vmul.f32 %v644, %v347
  %648 = vrot.lane.b32.xlu0 %v645, 80
  %v649 = vpop.permute.xlu0 %648
  %v651 = vmul.f32 %v644, %v649
  %653 = vrot.lane.b32.xlu0 %v651, 16
  %v654 = vpop.permute.xlu0 %653
  %v656 = vadd.f32 %v646, %v654
  %v657 = vtanh.pop %v656
  %659 = vrot.lane.b32.xlu0 %v657, 16
  %v660 = vpop.permute.xlu0 %659
  %v662 = vmul.f32 %v644, %v660
  %665 = vset.pattern.permute.xlu0 0
  %666 = vperm.xlu0 %665, %v567
  %v667 = vpop.permute.xlu0 %666
  %668 = vset.pattern.permute.xlu0 0
  %669 = vperm.xlu0 %668, %v568
  %v670 = vpop.permute.xlu0 %669
  %v671 = vadd.s32 %v206, 4294967292
  %v672 = vlaneseq
  %v673 = vshrl.u32 %v672, 7
  %v674 = vsub.s32 %v671, %v673
  %v675 = vrot.slane %v667, %v674
  %v676 = vlaneseq
  %v677 = vshrl.u32 %v676, 7
  %v678 = vsub.s32 %v671, %v677
  %v679 = vrot.slane %v670, %v678
  %v680 = vsel %vm215, %v679, %v675
  %vm682 = vcmask 58400
  %683 = vst.msk [vmem:[%s8] sm:$0x3] %vm682, %v680
  %685 = vrot.lane.b32.xlu0 %v662, 112
  %v686 = vpop.permute.xlu0 %685
  %vm688 = vcmask 255104
  %689 = vst.msk [vmem:[%s9] sm:$0x3] %vm688, %v686
  %v690 = vpack.c.bf16 %v662, %v662
  %692 = vrot.lane.b32.xlu0 %v690, 96
  %v693 = vpop.permute.xlu0 %692
  %v695 = vsel %vm61, %v693, 0
  %697 = vmatprep.subr.bf16.mxu0 0
  %698 = vmatpush1.bf16.msra.mxu0 0
  %699 = vmatprep.subr.bf16.mxu0 0
  %700 = vmatpush1.bf16.msra.mxu0 0
  %701 = vmatprep.subr.bf16.mxu0 0
  %702 = vmatpush1.bf16.msra.mxu0 0
  %703 = vmatprep.subr.bf16.mxu0 0
  %704 = vmatpush1.bf16.msra.mxu0 0
  %705 = vmatprep.subr.bf16.mxu0 0
  %706 = vmatpush1.bf16.msra.mxu0 0
  %707 = vmatprep.subr.bf16.mxu0 0
  %708 = vmatpush1.bf16.msra.mxu0 0
  %709 = vmatprep.subr.bf16.mxu0 0
  %710 = vmatpush1.bf16.msra.mxu0 0
  %711 = vmatprep.subr.bf16.mxu0 0
  %712 = vmatpush1.bf16.msra.mxu0 %v59
  %713 = vmatprep.subr.bf16.mxu0 0
  %714 = vmatpush2.bf16.msra.mxu0 0
  %715 = vmatprep.subr.bf16.mxu0 0
  %716 = vmatpush2.bf16.msra.mxu0 0
  %717 = vmatprep.subr.bf16.mxu0 0
  %718 = vmatpush2.bf16.msra.mxu0 0
  %719 = vmatprep.subr.bf16.mxu0 0
  %720 = vmatpush2.bf16.msra.mxu0 0
  %721 = vmatprep.subr.bf16.mxu0 0
  %722 = vmatpush2.bf16.msra.mxu0 0
  %723 = vmatprep.subr.bf16.mxu0 0
  %724 = vmatpush2.bf16.msra.mxu0 0
  %725 = vmatprep.subr.bf16.mxu0 0
  %726 = vmatpush2.bf16.msra.mxu0 0
  %727 = vmatprep.subr.bf16.mxu0 0
  %728 = vmatpush2.bf16.msra.mxu0 0
  %729 = vmatprep.mubr.bf16.mxu0 0
  %730 = vmatmul.mubr.bf16.gmra.mxu0 %v695
  %v731 = vpop.f32.mrf.mxu0
  %v732 = vadd.f32 0.0, %v731
  %v733 = vpop.f32.mrf.mxu0
  %v734 = vpop.f32.mrf.mxu0
  %v735 = vpop.f32.mrf.mxu0
  %736 = vdwg.mxu0
  %v737 = vpack.c.bf16 %v656, %v656
  %739 = vrot.lane.b32.xlu0 %v737, 112
  %v740 = vpop.permute.xlu0 %739
  %v742 = vsel %vm61, %v740, 0
  %744 = vmatprep.subr.bf16.mxu0 0
  %745 = vmatpush1.bf16.msra.mxu0 0
  %746 = vmatprep.subr.bf16.mxu0 0
  %747 = vmatpush1.bf16.msra.mxu0 0
  %748 = vmatprep.subr.bf16.mxu0 0
  %749 = vmatpush1.bf16.msra.mxu0 0
  %750 = vmatprep.subr.bf16.mxu0 0
  %751 = vmatpush1.bf16.msra.mxu0 0
  %752 = vmatprep.subr.bf16.mxu0 0
  %753 = vmatpush1.bf16.msra.mxu0 0
  %754 = vmatprep.subr.bf16.mxu0 0
  %755 = vmatpush1.bf16.msra.mxu0 0
  %756 = vmatprep.subr.bf16.mxu0 0
  %757 = vmatpush1.bf16.msra.mxu0 0
  %758 = vmatprep.subr.bf16.mxu0 0
  %759 = vmatpush1.bf16.msra.mxu0 %v109
  %760 = vmatprep.subr.bf16.mxu0 0
  %761 = vmatpush2.bf16.msra.mxu0 0
  %762 = vmatprep.subr.bf16.mxu0 0
  %763 = vmatpush2.bf16.msra.mxu0 0
  %764 = vmatprep.subr.bf16.mxu0 0
  %765 = vmatpush2.bf16.msra.mxu0 0
  %766 = vmatprep.subr.bf16.mxu0 0
  %767 = vmatpush2.bf16.msra.mxu0 0
  %768 = vmatprep.subr.bf16.mxu0 0
  %769 = vmatpush2.bf16.msra.mxu0 0
  %770 = vmatprep.subr.bf16.mxu0 0
  %771 = vmatpush2.bf16.msra.mxu0 0
  %772 = vmatprep.subr.bf16.mxu0 0
  %773 = vmatpush2.bf16.msra.mxu0 0
  %774 = vmatprep.subr.bf16.mxu0 0
  %775 = vmatpush2.bf16.msra.mxu0 0
  %776 = vmatprep.mubr.bf16.mxu0 0
  %777 = vmatmul.mubr.bf16.gmra.mxu0 %v742
  %v778 = vpop.f32.mrf.mxu0
  %v779 = vadd.f32 0.0, %v778
  %v780 = vpop.f32.mrf.mxu0
  %v781 = vpop.f32.mrf.mxu0
  %v782 = vpop.f32.mrf.mxu0
  %783 = vdwg.mxu0
  %v784 = vadd.f32 %v732, %v779
  %785 = vrot.lane.b32.xlu0 %v34, 112
  %v786 = vpop.permute.xlu0 %785
  %v788 = vadd.f32 %v784, %v786
  %v791 = vunpack.c.l.s4 1966171168
  %v792 = vunpack.c.0.s8 %v791
  %v793 = vlaneseq
  %v794 = vshrl.u32 %v793, 7
  %v795 = vsub.s32 %v792, %v794
  %v796 = vrot.slane %v788, %v795
  %v797 = vcombine.high %v796, %v796
  %v799 = vunpack.c.l.s4 1966171168
  %v800 = vunpack.c.0.s8 %v799
  %v801 = vlaneseq
  %v802 = vshrl.u32 %v801, 7
  %v803 = vsub.s32 %v800, %v802
  %v804 = vrot.slane %v796, %v803
  %v806 = vunpack.c.l.s4 1966171168
  %v807 = vunpack.c.0.s8 %v806
  %v808 = vlaneseq
  %v809 = vshrl.u32 %v808, 7
  %v810 = vsub.s32 %v807, %v809
  %v811 = vrot.slane %v797, %v810
  %v812 = vlaneseq
  %v813 = vshrl.u32 %v812, 7
  %v814 = vsub.s32 0, %v813
  %v815 = vrot.slane %v804, %v814
  %v816 = vlaneseq
  %v817 = vshrl.u32 %v816, 7
  %v818 = vsub.s32 0, %v817
  %v819 = vrot.slane %v811, %v818
  %v822 = vadd.f32 %v32, %v815
  %v823 = vadd.f32 %v33, %v819
  %v824 = vtanh.pop %v822
  %v825 = vtanh.pop %v823
  %v826 = vmul.f32 %v824, %v46
  %v827 = vmul.f32 %v825, %v46
  %v828 = vsel %vm192, %v826, 0.0
  %829 = vadd.xlane.f32.xlu0 %v828
  %v830 = vpop.xlane.xlu0 %829
  %v831 = vsel %vm192, %v827, 0.0
  %832 = vadd.xlane.f32.xlu0 %v831
  %v833 = vpop.xlane.xlu0 %832
  %v834 = vmul.f32 %v830, 1.442695
  %v835 = vpow.pop %v834
  %v836 = vmul.f32 %v833, 1.442695
  %v837 = vpow.pop %v836
  %v840 = vlaneseq
  %v841 = vshrl.u32 %v840, 7
  %v842 = vsub.s32 %v206, %v841
  %v843 = vrot.slane %v835, %v842
  %v844 = vlaneseq
  %v845 = vshrl.u32 %v844, 7
  %v846 = vsub.s32 %v206, %v845
  %v847 = vrot.slane %v837, %v846
  %v848 = vsel %vm215, %v847, %v843
  %v850 = vsel %vm218, %v848, 0.0
  %851 = vadd.xlane.f32.xlu0 %v850
  %v852 = vpop.xlane.xlu0 %851
  %v853 = vrcp.pop %v852
  %v855 = vlaneseq
  %v856 = vshrl.u32 %v855, 7
  %v857 = vsub.s32 0, %v856
  %v858 = vrot.slane %v853, %v857
  %v859 = vlaneseq
  %v860 = vshrl.u32 %v859, 7
  %v861 = vsub.s32 1, %v860
  %v862 = vrot.slane %v853, %v861
  %v865 = vmul.f32 %v835, %v858
  %v866 = vmul.f32 %v837, %v862
  %s868 = sor.u32 256, 8
  %869 = vbcast.lane.b32.xlu0 %v240, %s868
  %v870 = vpop.permute.xlu0 %869
  %s872 = sor.u32 256, 8
  %873 = vbcast.lane.b32.xlu0 %v247, %s872
  %v874 = vpop.permute.xlu0 %873
  %v877 = vmul.f32 %v865, %v870
  %v878 = vmul.f32 %v866, %v874
  %v879 = vpack.c.bf16 %v877, %v877
  %v880 = vpack.c.bf16 %v878, %v878
  %v883 = vunpack.c.l.b16 %v879
  %v884 = vunpack.c.l.b16 %v880
  %885 = vset.pattern.permute.xlu0 0
  %886 = vperm.xlu0 %885, %v883
  %v887 = vpop.permute.xlu0 %886
  %888 = vset.pattern.permute.xlu0 0
  %889 = vperm.xlu0 %888, %v884
  %v890 = vpop.permute.xlu0 %889
  %v891 = vlaneseq
  %v892 = vshrl.u32 %v891, 7
  %v893 = vsub.s32 %v206, %v892
  %v894 = vrot.slane %v887, %v893
  %v895 = vlaneseq
  %v896 = vshrl.u32 %v895, 7
  %v897 = vsub.s32 %v206, %v896
  %v898 = vrot.slane %v890, %v897
  %v899 = vsel %vm215, %v898, %v894
  %v900 = vpack.c.b16 %v899, %v899
  %902 = vrot.lane.b32.xlu0 %v732, 120
  %v903 = vpop.permute.xlu0 %902
  %v906 = vsel %vm281, %v900, 0
  %908 = vmatprep.subr.bf16.mxu0 0
  %909 = vmatpush1.bf16.msra.mxu0 0
  %910 = vmatprep.subr.bf16.mxu0 0
  %911 = vmatpush1.bf16.msra.mxu0 0
  %912 = vmatprep.subr.bf16.mxu0 0
  %913 = vmatpush1.bf16.msra.mxu0 0
  %914 = vmatprep.subr.bf16.mxu0 0
  %915 = vmatpush1.bf16.msra.mxu0 0
  %916 = vmatprep.subr.bf16.mxu0 0
  %917 = vmatpush1.bf16.msra.mxu0 0
  %918 = vmatprep.subr.bf16.mxu0 0
  %919 = vmatpush1.bf16.msra.mxu0 0
  %920 = vmatprep.subr.bf16.mxu0 0
  %921 = vmatpush1.bf16.msra.mxu0 0
  %922 = vmatprep.subr.bf16.mxu0 0
  %923 = vmatpush1.bf16.msra.mxu0 %v287
  %924 = vmatprep.subr.bf16.mxu0 0
  %925 = vmatpush2.bf16.msra.mxu0 0
  %926 = vmatprep.subr.bf16.mxu0 0
  %927 = vmatpush2.bf16.msra.mxu0 0
  %928 = vmatprep.subr.bf16.mxu0 0
  %929 = vmatpush2.bf16.msra.mxu0 0
  %930 = vmatprep.subr.bf16.mxu0 0
  %931 = vmatpush2.bf16.msra.mxu0 0
  %932 = vmatprep.subr.bf16.mxu0 0
  %933 = vmatpush2.bf16.msra.mxu0 0
  %934 = vmatprep.subr.bf16.mxu0 0
  %935 = vmatpush2.bf16.msra.mxu0 0
  %936 = vmatprep.subr.bf16.mxu0 0
  %937 = vmatpush2.bf16.msra.mxu0 0
  %938 = vmatprep.subr.bf16.mxu0 0
  %939 = vmatpush2.bf16.msra.mxu0 0
  %940 = vmatprep.mubr.bf16.mxu0 0
  %941 = vmatmul.mubr.bf16.gmra.mxu0 %v906
  %v942 = vpop.f32.mrf.mxu0
  %v943 = vadd.f32 %v903, %v942
  %v944 = vpop.f32.mrf.mxu0
  %v945 = vpop.f32.mrf.mxu0
  %v946 = vpop.f32.mrf.mxu0
  %947 = vdwg.mxu0
  %v948 = vadd.f32 %v943, %v53
  %v949 = vxor.u32 %v948, 2147483648
  %v950 = vmul.f32 %v949, 1.442695
  %v951 = vpow.pop %v950
  %v952 = vadd.f32 %v951, 1.0
  %v953 = vrcp.pop %v952
  %v954 = vmul.f32 1.0, %v953
  %v955 = vtanh.pop %v948
  %v956 = vmul.f32 %v954, %v656
  %958 = vrot.lane.b32.xlu0 %v955, 80
  %v959 = vpop.permute.xlu0 %958
  %v961 = vmul.f32 %v954, %v959
  %963 = vrot.lane.b32.xlu0 %v961, 16
  %v964 = vpop.permute.xlu0 %963
  %v966 = vadd.f32 %v956, %v964
  %v967 = vtanh.pop %v966
  %969 = vrot.lane.b32.xlu0 %v967, 16
  %v970 = vpop.permute.xlu0 %969
  %v972 = vmul.f32 %v954, %v970
  %975 = vset.pattern.permute.xlu0 0
  %976 = vperm.xlu0 %975, %v877
  %v977 = vpop.permute.xlu0 %976
  %978 = vset.pattern.permute.xlu0 0
  %979 = vperm.xlu0 %978, %v878
  %v980 = vpop.permute.xlu0 %979
  %v981 = vadd.s32 %v206, 4294967288
  %v982 = vlaneseq
  %v983 = vshrl.u32 %v982, 7
  %v984 = vsub.s32 %v981, %v983
  %v985 = vrot.slane %v977, %v984
  %v986 = vlaneseq
  %v987 = vshrl.u32 %v986, 7
  %v988 = vsub.s32 %v981, %v987
  %v989 = vrot.slane %v980, %v988
  %v990 = vsel %vm215, %v989, %v985
  %vm992 = vcmask 91200
  %993 = vst.msk [vmem:[%s8] sm:$0x3] %vm992, %v990
  %vm994 = vcmask 386304
  %995 = vst.msk [vmem:[%s9] sm:$0x3] %vm994, %v972
  %v996 = vpack.c.bf16 %v972, %v972
  %998 = vrot.lane.b32.xlu0 %v996, 96
  %v999 = vpop.permute.xlu0 %998
  %v1001 = vsel %vm61, %v999, 0
  %1003 = vmatprep.subr.bf16.mxu0 0
  %1004 = vmatpush1.bf16.msra.mxu0 0
  %1005 = vmatprep.subr.bf16.mxu0 0
  %1006 = vmatpush1.bf16.msra.mxu0 0
  %1007 = vmatprep.subr.bf16.mxu0 0
  %1008 = vmatpush1.bf16.msra.mxu0 0
  %1009 = vmatprep.subr.bf16.mxu0 0
  %1010 = vmatpush1.bf16.msra.mxu0 0
  %1011 = vmatprep.subr.bf16.mxu0 0
  %1012 = vmatpush1.bf16.msra.mxu0 0
  %1013 = vmatprep.subr.bf16.mxu0 0
  %1014 = vmatpush1.bf16.msra.mxu0 0
  %1015 = vmatprep.subr.bf16.mxu0 0
  %1016 = vmatpush1.bf16.msra.mxu0 0
  %1017 = vmatprep.subr.bf16.mxu0 0
  %1018 = vmatpush1.bf16.msra.mxu0 %v59
  %1019 = vmatprep.subr.bf16.mxu0 0
  %1020 = vmatpush2.bf16.msra.mxu0 0
  %1021 = vmatprep.subr.bf16.mxu0 0
  %1022 = vmatpush2.bf16.msra.mxu0 0
  %1023 = vmatprep.subr.bf16.mxu0 0
  %1024 = vmatpush2.bf16.msra.mxu0 0
  %1025 = vmatprep.subr.bf16.mxu0 0
  %1026 = vmatpush2.bf16.msra.mxu0 0
  %1027 = vmatprep.subr.bf16.mxu0 0
  %1028 = vmatpush2.bf16.msra.mxu0 0
  %1029 = vmatprep.subr.bf16.mxu0 0
  %1030 = vmatpush2.bf16.msra.mxu0 0
  %1031 = vmatprep.subr.bf16.mxu0 0
  %1032 = vmatpush2.bf16.msra.mxu0 0
  %1033 = vmatprep.subr.bf16.mxu0 0
  %1034 = vmatpush2.bf16.msra.mxu0 0
  %1035 = vmatprep.mubr.bf16.mxu0 0
  %1036 = vmatmul.mubr.bf16.gmra.mxu0 %v1001
  %v1037 = vpop.f32.mrf.mxu0
  %v1038 = vadd.f32 0.0, %v1037
  %v1039 = vpop.f32.mrf.mxu0
  %v1040 = vpop.f32.mrf.mxu0
  %v1041 = vpop.f32.mrf.mxu0
  %1042 = vdwg.mxu0
  %v1043 = vpack.c.bf16 %v966, %v966
  %1045 = vrot.lane.b32.xlu0 %v1043, 112
  %v1046 = vpop.permute.xlu0 %1045
  %v1048 = vsel %vm61, %v1046, 0
  %1050 = vmatprep.subr.bf16.mxu0 0
  %1051 = vmatpush1.bf16.msra.mxu0 0
  %1052 = vmatprep.subr.bf16.mxu0 0
  %1053 = vmatpush1.bf16.msra.mxu0 0
  %1054 = vmatprep.subr.bf16.mxu0 0
  %1055 = vmatpush1.bf16.msra.mxu0 0
  %1056 = vmatprep.subr.bf16.mxu0 0
  %1057 = vmatpush1.bf16.msra.mxu0 0
  %1058 = vmatprep.subr.bf16.mxu0 0
  %1059 = vmatpush1.bf16.msra.mxu0 0
  %1060 = vmatprep.subr.bf16.mxu0 0
  %1061 = vmatpush1.bf16.msra.mxu0 0
  %1062 = vmatprep.subr.bf16.mxu0 0
  %1063 = vmatpush1.bf16.msra.mxu0 0
  %1064 = vmatprep.subr.bf16.mxu0 0
  %1065 = vmatpush1.bf16.msra.mxu0 %v109
  %1066 = vmatprep.subr.bf16.mxu0 0
  %1067 = vmatpush2.bf16.msra.mxu0 0
  %1068 = vmatprep.subr.bf16.mxu0 0
  %1069 = vmatpush2.bf16.msra.mxu0 0
  %1070 = vmatprep.subr.bf16.mxu0 0
  %1071 = vmatpush2.bf16.msra.mxu0 0
  %1072 = vmatprep.subr.bf16.mxu0 0
  %1073 = vmatpush2.bf16.msra.mxu0 0
  %1074 = vmatprep.subr.bf16.mxu0 0
  %1075 = vmatpush2.bf16.msra.mxu0 0
  %1076 = vmatprep.subr.bf16.mxu0 0
  %1077 = vmatpush2.bf16.msra.mxu0 0
  %1078 = vmatprep.subr.bf16.mxu0 0
  %1079 = vmatpush2.bf16.msra.mxu0 0
  %1080 = vmatprep.subr.bf16.mxu0 0
  %1081 = vmatpush2.bf16.msra.mxu0 0
  %1082 = vmatprep.mubr.bf16.mxu0 0
  %1083 = vmatmul.mubr.bf16.gmra.mxu0 %v1048
  %v1084 = vpop.f32.mrf.mxu0
  %v1085 = vadd.f32 0.0, %v1084
  %v1086 = vpop.f32.mrf.mxu0
  %v1087 = vpop.f32.mrf.mxu0
  %v1088 = vpop.f32.mrf.mxu0
  %1089 = vdwg.mxu0
  %v1090 = vadd.f32 %v1038, %v1085
  %1091 = vrot.lane.b32.xlu0 %v34, 104
  %v1092 = vpop.permute.xlu0 %1091
  %v1094 = vadd.f32 %v1090, %v1092
  %v1097 = vunpack.c.l.s4 1966171168
  %v1098 = vunpack.c.0.s8 %v1097
  %v1099 = vlaneseq
  %v1100 = vshrl.u32 %v1099, 7
  %v1101 = vsub.s32 %v1098, %v1100
  %v1102 = vrot.slane %v1094, %v1101
  %v1103 = vcombine.high %v1102, %v1102
  %v1105 = vunpack.c.l.s4 1966171168
  %v1106 = vunpack.c.0.s8 %v1105
  %v1107 = vlaneseq
  %v1108 = vshrl.u32 %v1107, 7
  %v1109 = vsub.s32 %v1106, %v1108
  %v1110 = vrot.slane %v1102, %v1109
  %v1112 = vunpack.c.l.s4 1966171168
  %v1113 = vunpack.c.0.s8 %v1112
  %v1114 = vlaneseq
  %v1115 = vshrl.u32 %v1114, 7
  %v1116 = vsub.s32 %v1113, %v1115
  %v1117 = vrot.slane %v1103, %v1116
  %v1118 = vlaneseq
  %v1119 = vshrl.u32 %v1118, 7
  %v1120 = vsub.s32 0, %v1119
  %v1121 = vrot.slane %v1110, %v1120
  %v1122 = vlaneseq
  %v1123 = vshrl.u32 %v1122, 7
  %v1124 = vsub.s32 0, %v1123
  %v1125 = vrot.slane %v1117, %v1124
  %v1128 = vadd.f32 %v32, %v1121
  %v1129 = vadd.f32 %v33, %v1125
  %v1130 = vtanh.pop %v1128
  %v1131 = vtanh.pop %v1129
  %v1132 = vmul.f32 %v1130, %v46
  %v1133 = vmul.f32 %v1131, %v46
  %v1134 = vsel %vm192, %v1132, 0.0
  %1135 = vadd.xlane.f32.xlu0 %v1134
  %v1136 = vpop.xlane.xlu0 %1135
  %v1137 = vsel %vm192, %v1133, 0.0
  %1138 = vadd.xlane.f32.xlu0 %v1137
  %v1139 = vpop.xlane.xlu0 %1138
  %v1140 = vmul.f32 %v1136, 1.442695
  %v1141 = vpow.pop %v1140
  %v1142 = vmul.f32 %v1139, 1.442695
  %v1143 = vpow.pop %v1142
  %v1146 = vlaneseq
  %v1147 = vshrl.u32 %v1146, 7
  %v1148 = vsub.s32 %v206, %v1147
  %v1149 = vrot.slane %v1141, %v1148
  %v1150 = vlaneseq
  %v1151 = vshrl.u32 %v1150, 7
  %v1152 = vsub.s32 %v206, %v1151
  %v1153 = vrot.slane %v1143, %v1152
  %v1154 = vsel %vm215, %v1153, %v1149
  %v1156 = vsel %vm218, %v1154, 0.0
  %1157 = vadd.xlane.f32.xlu0 %v1156
  %v1158 = vpop.xlane.xlu0 %1157
  %v1159 = vrcp.pop %v1158
  %v1161 = vlaneseq
  %v1162 = vshrl.u32 %v1161, 7
  %v1163 = vsub.s32 0, %v1162
  %v1164 = vrot.slane %v1159, %v1163
  %v1165 = vlaneseq
  %v1166 = vshrl.u32 %v1165, 7
  %v1167 = vsub.s32 1, %v1166
  %v1168 = vrot.slane %v1159, %v1167
  %v1171 = vmul.f32 %v1141, %v1164
  %v1172 = vmul.f32 %v1143, %v1168
  %s1174 = sor.u32 256, 12
  %1175 = vbcast.lane.b32.xlu0 %v240, %s1174
  %v1176 = vpop.permute.xlu0 %1175
  %s1178 = sor.u32 256, 12
  %1179 = vbcast.lane.b32.xlu0 %v247, %s1178
  %v1180 = vpop.permute.xlu0 %1179
  %v1183 = vmul.f32 %v1171, %v1176
  %v1184 = vmul.f32 %v1172, %v1180
  %v1185 = vpack.c.bf16 %v1183, %v1183
  %v1186 = vpack.c.bf16 %v1184, %v1184
  %v1189 = vunpack.c.l.b16 %v1185
  %v1190 = vunpack.c.l.b16 %v1186
  %1191 = vset.pattern.permute.xlu0 0
  %1192 = vperm.xlu0 %1191, %v1189
  %v1193 = vpop.permute.xlu0 %1192
  %1194 = vset.pattern.permute.xlu0 0
  %1195 = vperm.xlu0 %1194, %v1190
  %v1196 = vpop.permute.xlu0 %1195
  %v1197 = vlaneseq
  %v1198 = vshrl.u32 %v1197, 7
  %v1199 = vsub.s32 %v206, %v1198
  %v1200 = vrot.slane %v1193, %v1199
  %v1201 = vlaneseq
  %v1202 = vshrl.u32 %v1201, 7
  %v1203 = vsub.s32 %v206, %v1202
  %v1204 = vrot.slane %v1196, %v1203
  %v1205 = vsel %vm215, %v1204, %v1200
  %v1206 = vpack.c.b16 %v1205, %v1205
  %1208 = vrot.lane.b32.xlu0 %v1038, 120
  %v1209 = vpop.permute.xlu0 %1208
  %v1212 = vsel %vm281, %v1206, 0
  %1214 = vmatprep.subr.bf16.mxu0 0
  %1215 = vmatpush1.bf16.msra.mxu0 0
  %1216 = vmatprep.subr.bf16.mxu0 0
  %1217 = vmatpush1.bf16.msra.mxu0 0
  %1218 = vmatprep.subr.bf16.mxu0 0
  %1219 = vmatpush1.bf16.msra.mxu0 0
  %1220 = vmatprep.subr.bf16.mxu0 0
  %1221 = vmatpush1.bf16.msra.mxu0 0
  %1222 = vmatprep.subr.bf16.mxu0 0
  %1223 = vmatpush1.bf16.msra.mxu0 0
  %1224 = vmatprep.subr.bf16.mxu0 0
  %1225 = vmatpush1.bf16.msra.mxu0 0
  %1226 = vmatprep.subr.bf16.mxu0 0
  %1227 = vmatpush1.bf16.msra.mxu0 0
  %1228 = vmatprep.subr.bf16.mxu0 0
  %1229 = vmatpush1.bf16.msra.mxu0 %v287
  %1230 = vmatprep.subr.bf16.mxu0 0
  %1231 = vmatpush2.bf16.msra.mxu0 0
  %1232 = vmatprep.subr.bf16.mxu0 0
  %1233 = vmatpush2.bf16.msra.mxu0 0
  %1234 = vmatprep.subr.bf16.mxu0 0
  %1235 = vmatpush2.bf16.msra.mxu0 0
  %1236 = vmatprep.subr.bf16.mxu0 0
  %1237 = vmatpush2.bf16.msra.mxu0 0
  %1238 = vmatprep.subr.bf16.mxu0 0
  %1239 = vmatpush2.bf16.msra.mxu0 0
  %1240 = vmatprep.subr.bf16.mxu0 0
  %1241 = vmatpush2.bf16.msra.mxu0 0
  %1242 = vmatprep.subr.bf16.mxu0 0
  %1243 = vmatpush2.bf16.msra.mxu0 0
  %1244 = vmatprep.subr.bf16.mxu0 0
  %1245 = vmatpush2.bf16.msra.mxu0 0
  %1246 = vmatprep.mubr.bf16.mxu0 0
  %1247 = vmatmul.mubr.bf16.gmra.mxu0 %v1212
  %v1248 = vpop.f32.mrf.mxu0
  %v1249 = vadd.f32 %v1209, %v1248
  %v1250 = vpop.f32.mrf.mxu0
  %v1251 = vpop.f32.mrf.mxu0
  %v1252 = vpop.f32.mrf.mxu0
  %1253 = vdwg.mxu0
  %v1254 = vadd.f32 %v1249, %v53
  %v1255 = vxor.u32 %v1254, 2147483648
  %v1256 = vmul.f32 %v1255, 1.442695
  %v1257 = vpow.pop %v1256
  %v1258 = vadd.f32 %v1257, 1.0
  %v1259 = vrcp.pop %v1258
  %v1260 = vmul.f32 1.0, %v1259
  %v1261 = vtanh.pop %v1254
  %v1262 = vmul.f32 %v1260, %v966
  %1264 = vrot.lane.b32.xlu0 %v1261, 80
  %v1265 = vpop.permute.xlu0 %1264
  %v1267 = vmul.f32 %v1260, %v1265
  %1269 = vrot.lane.b32.xlu0 %v1267, 16
  %v1270 = vpop.permute.xlu0 %1269
  %v1272 = vadd.f32 %v1262, %v1270
  %v1273 = vtanh.pop %v1272
  %1275 = vrot.lane.b32.xlu0 %v1273, 16
  %v1276 = vpop.permute.xlu0 %1275
  %v1278 = vmul.f32 %v1260, %v1276
  %1281 = vset.pattern.permute.xlu0 0
  %1282 = vperm.xlu0 %1281, %v1183
  %v1283 = vpop.permute.xlu0 %1282
  %1284 = vset.pattern.permute.xlu0 0
  %1285 = vperm.xlu0 %1284, %v1184
  %v1286 = vpop.permute.xlu0 %1285
  %v1287 = vadd.s32 %v206, 4294967284
  %v1288 = vlaneseq
  %v1289 = vshrl.u32 %v1288, 7
  %v1290 = vsub.s32 %v1287, %v1289
  %v1291 = vrot.slane %v1283, %v1290
  %v1292 = vlaneseq
  %v1293 = vshrl.u32 %v1292, 7
  %v1294 = vsub.s32 %v1287, %v1293
  %v1295 = vrot.slane %v1286, %v1294
  %v1296 = vsel %vm215, %v1295, %v1291
  %vm1298 = vcmask 124000
  %1299 = vst.msk [vmem:[%s8] sm:$0x3] %vm1298, %v1296
  %1301 = vrot.lane.b32.xlu0 %v1278, 16
  %v1302 = vpop.permute.xlu0 %1301
  %vm1304 = vcmask 517504
  %1305 = vst.msk [vmem:[%s9] sm:$0x3] %vm1304, %v1302
  %v1306 = vpack.c.bf16 %v1278, %v1278
  %1308 = vrot.lane.b32.xlu0 %v1306, 96
  %v1309 = vpop.permute.xlu0 %1308
  %v1311 = vsel %vm61, %v1309, 0
  %1313 = vmatprep.subr.bf16.mxu0 0
  %1314 = vmatpush1.bf16.msra.mxu0 0
  %1315 = vmatprep.subr.bf16.mxu0 0
  %1316 = vmatpush1.bf16.msra.mxu0 0
  %1317 = vmatprep.subr.bf16.mxu0 0
  %1318 = vmatpush1.bf16.msra.mxu0 0
  %1319 = vmatprep.subr.bf16.mxu0 0
  %1320 = vmatpush1.bf16.msra.mxu0 0
  %1321 = vmatprep.subr.bf16.mxu0 0
  %1322 = vmatpush1.bf16.msra.mxu0 0
  %1323 = vmatprep.subr.bf16.mxu0 0
  %1324 = vmatpush1.bf16.msra.mxu0 0
  %1325 = vmatprep.subr.bf16.mxu0 0
  %1326 = vmatpush1.bf16.msra.mxu0 0
  %1327 = vmatprep.subr.bf16.mxu0 0
  %1328 = vmatpush1.bf16.msra.mxu0 %v59
  %1329 = vmatprep.subr.bf16.mxu0 0
  %1330 = vmatpush2.bf16.msra.mxu0 0
  %1331 = vmatprep.subr.bf16.mxu0 0
  %1332 = vmatpush2.bf16.msra.mxu0 0
  %1333 = vmatprep.subr.bf16.mxu0 0
  %1334 = vmatpush2.bf16.msra.mxu0 0
  %1335 = vmatprep.subr.bf16.mxu0 0
  %1336 = vmatpush2.bf16.msra.mxu0 0
  %1337 = vmatprep.subr.bf16.mxu0 0
  %1338 = vmatpush2.bf16.msra.mxu0 0
  %1339 = vmatprep.subr.bf16.mxu0 0
  %1340 = vmatpush2.bf16.msra.mxu0 0
  %1341 = vmatprep.subr.bf16.mxu0 0
  %1342 = vmatpush2.bf16.msra.mxu0 0
  %1343 = vmatprep.subr.bf16.mxu0 0
  %1344 = vmatpush2.bf16.msra.mxu0 0
  %1345 = vmatprep.mubr.bf16.mxu0 0
  %1346 = vmatmul.mubr.bf16.gmra.mxu0 %v1311
  %v1347 = vpop.f32.mrf.mxu0
  %v1348 = vadd.f32 0.0, %v1347
  %v1349 = vpop.f32.mrf.mxu0
  %v1350 = vpop.f32.mrf.mxu0
  %v1351 = vpop.f32.mrf.mxu0
  %1352 = vdwg.mxu0
  %v1353 = vpack.c.bf16 %v1272, %v1272
  %1355 = vrot.lane.b32.xlu0 %v1353, 112
  %v1356 = vpop.permute.xlu0 %1355
  %v1358 = vsel %vm61, %v1356, 0
  %1360 = vmatprep.subr.bf16.mxu0 0
  %1361 = vmatpush1.bf16.msra.mxu0 0
  %1362 = vmatprep.subr.bf16.mxu0 0
  %1363 = vmatpush1.bf16.msra.mxu0 0
  %1364 = vmatprep.subr.bf16.mxu0 0
  %1365 = vmatpush1.bf16.msra.mxu0 0
  %1366 = vmatprep.subr.bf16.mxu0 0
  %1367 = vmatpush1.bf16.msra.mxu0 0
  %1368 = vmatprep.subr.bf16.mxu0 0
  %1369 = vmatpush1.bf16.msra.mxu0 0
  %1370 = vmatprep.subr.bf16.mxu0 0
  %1371 = vmatpush1.bf16.msra.mxu0 0
  %1372 = vmatprep.subr.bf16.mxu0 0
  %1373 = vmatpush1.bf16.msra.mxu0 0
  %1374 = vmatprep.subr.bf16.mxu0 0
  %1375 = vmatpush1.bf16.msra.mxu0 %v109
  %1376 = vmatprep.subr.bf16.mxu0 0
  %1377 = vmatpush2.bf16.msra.mxu0 0
  %1378 = vmatprep.subr.bf16.mxu0 0
  %1379 = vmatpush2.bf16.msra.mxu0 0
  %1380 = vmatprep.subr.bf16.mxu0 0
  %1381 = vmatpush2.bf16.msra.mxu0 0
  %1382 = vmatprep.subr.bf16.mxu0 0
  %1383 = vmatpush2.bf16.msra.mxu0 0
  %1384 = vmatprep.subr.bf16.mxu0 0
  %1385 = vmatpush2.bf16.msra.mxu0 0
  %1386 = vmatprep.subr.bf16.mxu0 0
  %1387 = vmatpush2.bf16.msra.mxu0 0
  %1388 = vmatprep.subr.bf16.mxu0 0
  %1389 = vmatpush2.bf16.msra.mxu0 0
  %1390 = vmatprep.subr.bf16.mxu0 0
  %1391 = vmatpush2.bf16.msra.mxu0 0
  %1392 = vmatprep.mubr.bf16.mxu0 0
  %1393 = vmatmul.mubr.bf16.gmra.mxu0 %v1358
  %v1394 = vpop.f32.mrf.mxu0
  %v1395 = vadd.f32 0.0, %v1394
  %v1396 = vpop.f32.mrf.mxu0
  %v1397 = vpop.f32.mrf.mxu0
  %v1398 = vpop.f32.mrf.mxu0
  %1399 = vdwg.mxu0
  %v1400 = vadd.f32 %v1348, %v1395
  %1401 = vrot.lane.b32.xlu0 %v34, 96
  %v1402 = vpop.permute.xlu0 %1401
  %v1404 = vadd.f32 %v1400, %v1402
  %v1407 = vunpack.c.l.s4 1966171168
  %v1408 = vunpack.c.0.s8 %v1407
  %v1409 = vlaneseq
  %v1410 = vshrl.u32 %v1409, 7
  %v1411 = vsub.s32 %v1408, %v1410
  %v1412 = vrot.slane %v1404, %v1411
  %v1413 = vcombine.high %v1412, %v1412
  %v1415 = vunpack.c.l.s4 1966171168
  %v1416 = vunpack.c.0.s8 %v1415
  %v1417 = vlaneseq
  %v1418 = vshrl.u32 %v1417, 7
  %v1419 = vsub.s32 %v1416, %v1418
  %v1420 = vrot.slane %v1412, %v1419
  %v1422 = vunpack.c.l.s4 1966171168
  %v1423 = vunpack.c.0.s8 %v1422
  %v1424 = vlaneseq
  %v1425 = vshrl.u32 %v1424, 7
  %v1426 = vsub.s32 %v1423, %v1425
  %v1427 = vrot.slane %v1413, %v1426
  %v1428 = vlaneseq
  %v1429 = vshrl.u32 %v1428, 7
  %v1430 = vsub.s32 0, %v1429
  %v1431 = vrot.slane %v1420, %v1430
  %v1432 = vlaneseq
  %v1433 = vshrl.u32 %v1432, 7
  %v1434 = vsub.s32 0, %v1433
  %v1435 = vrot.slane %v1427, %v1434
  %v1438 = vadd.f32 %v32, %v1431
  %v1439 = vadd.f32 %v33, %v1435
  %v1440 = vtanh.pop %v1438
  %v1441 = vtanh.pop %v1439
  %v1442 = vmul.f32 %v1440, %v46
  %v1443 = vmul.f32 %v1441, %v46
  %v1444 = vsel %vm192, %v1442, 0.0
  %1445 = vadd.xlane.f32.xlu0 %v1444
  %v1446 = vpop.xlane.xlu0 %1445
  %v1447 = vsel %vm192, %v1443, 0.0
  %1448 = vadd.xlane.f32.xlu0 %v1447
  %v1449 = vpop.xlane.xlu0 %1448
  %v1450 = vmul.f32 %v1446, 1.442695
  %v1451 = vpow.pop %v1450
  %v1452 = vmul.f32 %v1449, 1.442695
  %v1453 = vpow.pop %v1452
  %v1456 = vlaneseq
  %v1457 = vshrl.u32 %v1456, 7
  %v1458 = vsub.s32 %v206, %v1457
  %v1459 = vrot.slane %v1451, %v1458
  %v1460 = vlaneseq
  %v1461 = vshrl.u32 %v1460, 7
  %v1462 = vsub.s32 %v206, %v1461
  %v1463 = vrot.slane %v1453, %v1462
  %v1464 = vsel %vm215, %v1463, %v1459
  %v1466 = vsel %vm218, %v1464, 0.0
  %1467 = vadd.xlane.f32.xlu0 %v1466
  %v1468 = vpop.xlane.xlu0 %1467
  %v1469 = vrcp.pop %v1468
  %v1471 = vlaneseq
  %v1472 = vshrl.u32 %v1471, 7
  %v1473 = vsub.s32 0, %v1472
  %v1474 = vrot.slane %v1469, %v1473
  %v1475 = vlaneseq
  %v1476 = vshrl.u32 %v1475, 7
  %v1477 = vsub.s32 1, %v1476
  %v1478 = vrot.slane %v1469, %v1477
  %v1481 = vmul.f32 %v1451, %v1474
  %v1482 = vmul.f32 %v1453, %v1478
  %s1484 = sor.u32 256, 16
  %1485 = vbcast.lane.b32.xlu0 %v240, %s1484
  %v1486 = vpop.permute.xlu0 %1485
  %s1488 = sor.u32 256, 16
  %1489 = vbcast.lane.b32.xlu0 %v247, %s1488
  %v1490 = vpop.permute.xlu0 %1489
  %v1493 = vmul.f32 %v1481, %v1486
  %v1494 = vmul.f32 %v1482, %v1490
  %v1495 = vpack.c.bf16 %v1493, %v1493
  %v1496 = vpack.c.bf16 %v1494, %v1494
  %v1499 = vunpack.c.l.b16 %v1495
  %v1500 = vunpack.c.l.b16 %v1496
  %1501 = vset.pattern.permute.xlu0 0
  %1502 = vperm.xlu0 %1501, %v1499
  %v1503 = vpop.permute.xlu0 %1502
  %1504 = vset.pattern.permute.xlu0 0
  %1505 = vperm.xlu0 %1504, %v1500
  %v1506 = vpop.permute.xlu0 %1505
  %v1507 = vlaneseq
  %v1508 = vshrl.u32 %v1507, 7
  %v1509 = vsub.s32 %v206, %v1508
  %v1510 = vrot.slane %v1503, %v1509
  %v1511 = vlaneseq
  %v1512 = vshrl.u32 %v1511, 7
  %v1513 = vsub.s32 %v206, %v1512
  %v1514 = vrot.slane %v1506, %v1513
  %v1515 = vsel %vm215, %v1514, %v1510
  %v1516 = vpack.c.b16 %v1515, %v1515
  %1518 = vrot.lane.b32.xlu0 %v1348, 120
  %v1519 = vpop.permute.xlu0 %1518
  %v1522 = vsel %vm281, %v1516, 0
  %1524 = vmatprep.subr.bf16.mxu0 0
  %1525 = vmatpush1.bf16.msra.mxu0 0
  %1526 = vmatprep.subr.bf16.mxu0 0
  %1527 = vmatpush1.bf16.msra.mxu0 0
  %1528 = vmatprep.subr.bf16.mxu0 0
  %1529 = vmatpush1.bf16.msra.mxu0 0
  %1530 = vmatprep.subr.bf16.mxu0 0
  %1531 = vmatpush1.bf16.msra.mxu0 0
  %1532 = vmatprep.subr.bf16.mxu0 0
  %1533 = vmatpush1.bf16.msra.mxu0 0
  %1534 = vmatprep.subr.bf16.mxu0 0
  %1535 = vmatpush1.bf16.msra.mxu0 0
  %1536 = vmatprep.subr.bf16.mxu0 0
  %1537 = vmatpush1.bf16.msra.mxu0 0
  %1538 = vmatprep.subr.bf16.mxu0 0
  %1539 = vmatpush1.bf16.msra.mxu0 %v287
  %1540 = vmatprep.subr.bf16.mxu0 0
  %1541 = vmatpush2.bf16.msra.mxu0 0
  %1542 = vmatprep.subr.bf16.mxu0 0
  %1543 = vmatpush2.bf16.msra.mxu0 0
  %1544 = vmatprep.subr.bf16.mxu0 0
  %1545 = vmatpush2.bf16.msra.mxu0 0
  %1546 = vmatprep.subr.bf16.mxu0 0
  %1547 = vmatpush2.bf16.msra.mxu0 0
  %1548 = vmatprep.subr.bf16.mxu0 0
  %1549 = vmatpush2.bf16.msra.mxu0 0
  %1550 = vmatprep.subr.bf16.mxu0 0
  %1551 = vmatpush2.bf16.msra.mxu0 0
  %1552 = vmatprep.subr.bf16.mxu0 0
  %1553 = vmatpush2.bf16.msra.mxu0 0
  %1554 = vmatprep.subr.bf16.mxu0 0
  %1555 = vmatpush2.bf16.msra.mxu0 0
  %1556 = vmatprep.mubr.bf16.mxu0 0
  %1557 = vmatmul.mubr.bf16.gmra.mxu0 %v1522
  %v1558 = vpop.f32.mrf.mxu0
  %v1559 = vadd.f32 %v1519, %v1558
  %v1560 = vpop.f32.mrf.mxu0
  %v1561 = vpop.f32.mrf.mxu0
  %v1562 = vpop.f32.mrf.mxu0
  %1563 = vdwg.mxu0
  %v1564 = vadd.f32 %v1559, %v53
  %v1565 = vxor.u32 %v1564, 2147483648
  %v1566 = vmul.f32 %v1565, 1.442695
  %v1567 = vpow.pop %v1566
  %v1568 = vadd.f32 %v1567, 1.0
  %v1569 = vrcp.pop %v1568
  %v1570 = vmul.f32 1.0, %v1569
  %v1571 = vtanh.pop %v1564
  %v1572 = vmul.f32 %v1570, %v1272
  %1574 = vrot.lane.b32.xlu0 %v1571, 80
  %v1575 = vpop.permute.xlu0 %1574
  %v1577 = vmul.f32 %v1570, %v1575
  %1579 = vrot.lane.b32.xlu0 %v1577, 16
  %v1580 = vpop.permute.xlu0 %1579
  %v1582 = vadd.f32 %v1572, %v1580
  %v1583 = vtanh.pop %v1582
  %1585 = vrot.lane.b32.xlu0 %v1583, 16
  %v1586 = vpop.permute.xlu0 %1585
  %v1588 = vmul.f32 %v1570, %v1586
  %1591 = vset.pattern.permute.xlu0 0
  %1592 = vperm.xlu0 %1591, %v1493
  %v1593 = vpop.permute.xlu0 %1592
  %1594 = vset.pattern.permute.xlu0 0
  %1595 = vperm.xlu0 %1594, %v1494
  %v1596 = vpop.permute.xlu0 %1595
  %v1597 = vadd.s32 %v206, 4294967280
  %v1598 = vlaneseq
  %v1599 = vshrl.u32 %v1598, 7
  %v1600 = vsub.s32 %v1597, %v1599
  %v1601 = vrot.slane %v1593, %v1600
  %v1602 = vlaneseq
  %v1603 = vshrl.u32 %v1602, 7
  %v1604 = vsub.s32 %v1597, %v1603
  %v1605 = vrot.slane %v1596, %v1604
  %v1606 = vsel %vm215, %v1605, %v1601
  %vm1608 = vcmask 156800
  %1609 = vst.msk [vmem:[%s8] sm:$0x3] %vm1608, %v1606
  %1611 = vrot.lane.b32.xlu0 %v1588, 32
  %v1612 = vpop.permute.xlu0 %1611
  %vm1614 = vcmask 648704
  %1615 = vst.msk [vmem:[%s9] sm:$0x3] %vm1614, %v1612
  %v1616 = vpack.c.bf16 %v1588, %v1588
  %1618 = vrot.lane.b32.xlu0 %v1616, 96
  %v1619 = vpop.permute.xlu0 %1618
  %v1621 = vsel %vm61, %v1619, 0
  %1623 = vmatprep.subr.bf16.mxu0 0
  %1624 = vmatpush1.bf16.msra.mxu0 0
  %1625 = vmatprep.subr.bf16.mxu0 0
  %1626 = vmatpush1.bf16.msra.mxu0 0
  %1627 = vmatprep.subr.bf16.mxu0 0
  %1628 = vmatpush1.bf16.msra.mxu0 0
  %1629 = vmatprep.subr.bf16.mxu0 0
  %1630 = vmatpush1.bf16.msra.mxu0 0
  %1631 = vmatprep.subr.bf16.mxu0 0
  %1632 = vmatpush1.bf16.msra.mxu0 0
  %1633 = vmatprep.subr.bf16.mxu0 0
  %1634 = vmatpush1.bf16.msra.mxu0 0
  %1635 = vmatprep.subr.bf16.mxu0 0
  %1636 = vmatpush1.bf16.msra.mxu0 0
  %1637 = vmatprep.subr.bf16.mxu0 0
  %1638 = vmatpush1.bf16.msra.mxu0 %v59
  %1639 = vmatprep.subr.bf16.mxu0 0
  %1640 = vmatpush2.bf16.msra.mxu0 0
  %1641 = vmatprep.subr.bf16.mxu0 0
  %1642 = vmatpush2.bf16.msra.mxu0 0
  %1643 = vmatprep.subr.bf16.mxu0 0
  %1644 = vmatpush2.bf16.msra.mxu0 0
  %1645 = vmatprep.subr.bf16.mxu0 0
  %1646 = vmatpush2.bf16.msra.mxu0 0
  %1647 = vmatprep.subr.bf16.mxu0 0
  %1648 = vmatpush2.bf16.msra.mxu0 0
  %1649 = vmatprep.subr.bf16.mxu0 0
  %1650 = vmatpush2.bf16.msra.mxu0 0
  %1651 = vmatprep.subr.bf16.mxu0 0
  %1652 = vmatpush2.bf16.msra.mxu0 0
  %1653 = vmatprep.subr.bf16.mxu0 0
  %1654 = vmatpush2.bf16.msra.mxu0 0
  %1655 = vmatprep.mubr.bf16.mxu0 0
  %1656 = vmatmul.mubr.bf16.gmra.mxu0 %v1621
  %v1657 = vpop.f32.mrf.mxu0
  %v1658 = vadd.f32 0.0, %v1657
  %v1659 = vpop.f32.mrf.mxu0
  %v1660 = vpop.f32.mrf.mxu0
  %v1661 = vpop.f32.mrf.mxu0
  %1662 = vdwg.mxu0
  %v1663 = vpack.c.bf16 %v1582, %v1582
  %1665 = vrot.lane.b32.xlu0 %v1663, 112
  %v1666 = vpop.permute.xlu0 %1665
  %v1668 = vsel %vm61, %v1666, 0
  %1670 = vmatprep.subr.bf16.mxu0 0
  %1671 = vmatpush1.bf16.msra.mxu0 0
  %1672 = vmatprep.subr.bf16.mxu0 0
  %1673 = vmatpush1.bf16.msra.mxu0 0
  %1674 = vmatprep.subr.bf16.mxu0 0
  %1675 = vmatpush1.bf16.msra.mxu0 0
  %1676 = vmatprep.subr.bf16.mxu0 0
  %1677 = vmatpush1.bf16.msra.mxu0 0
  %1678 = vmatprep.subr.bf16.mxu0 0
  %1679 = vmatpush1.bf16.msra.mxu0 0
  %1680 = vmatprep.subr.bf16.mxu0 0
  %1681 = vmatpush1.bf16.msra.mxu0 0
  %1682 = vmatprep.subr.bf16.mxu0 0
  %1683 = vmatpush1.bf16.msra.mxu0 0
  %1684 = vmatprep.subr.bf16.mxu0 0
  %1685 = vmatpush1.bf16.msra.mxu0 %v109
  %1686 = vmatprep.subr.bf16.mxu0 0
  %1687 = vmatpush2.bf16.msra.mxu0 0
  %1688 = vmatprep.subr.bf16.mxu0 0
  %1689 = vmatpush2.bf16.msra.mxu0 0
  %1690 = vmatprep.subr.bf16.mxu0 0
  %1691 = vmatpush2.bf16.msra.mxu0 0
  %1692 = vmatprep.subr.bf16.mxu0 0
  %1693 = vmatpush2.bf16.msra.mxu0 0
  %1694 = vmatprep.subr.bf16.mxu0 0
  %1695 = vmatpush2.bf16.msra.mxu0 0
  %1696 = vmatprep.subr.bf16.mxu0 0
  %1697 = vmatpush2.bf16.msra.mxu0 0
  %1698 = vmatprep.subr.bf16.mxu0 0
  %1699 = vmatpush2.bf16.msra.mxu0 0
  %1700 = vmatprep.subr.bf16.mxu0 0
  %1701 = vmatpush2.bf16.msra.mxu0 0
  %1702 = vmatprep.mubr.bf16.mxu0 0
  %1703 = vmatmul.mubr.bf16.gmra.mxu0 %v1668
  %v1704 = vpop.f32.mrf.mxu0
  %v1705 = vadd.f32 0.0, %v1704
  %v1706 = vpop.f32.mrf.mxu0
  %v1707 = vpop.f32.mrf.mxu0
  %v1708 = vpop.f32.mrf.mxu0
  %1709 = vdwg.mxu0
  %v1710 = vadd.f32 %v1658, %v1705
  %1711 = vrot.lane.b32.xlu0 %v34, 88
  %v1712 = vpop.permute.xlu0 %1711
  %v1714 = vadd.f32 %v1710, %v1712
  %v1717 = vunpack.c.l.s4 1966171168
  %v1718 = vunpack.c.0.s8 %v1717
  %v1719 = vlaneseq
  %v1720 = vshrl.u32 %v1719, 7
  %v1721 = vsub.s32 %v1718, %v1720
  %v1722 = vrot.slane %v1714, %v1721
  %v1723 = vcombine.high %v1722, %v1722
  %v1725 = vunpack.c.l.s4 1966171168
  %v1726 = vunpack.c.0.s8 %v1725
  %v1727 = vlaneseq
  %v1728 = vshrl.u32 %v1727, 7
  %v1729 = vsub.s32 %v1726, %v1728
  %v1730 = vrot.slane %v1722, %v1729
  %v1732 = vunpack.c.l.s4 1966171168
  %v1733 = vunpack.c.0.s8 %v1732
  %v1734 = vlaneseq
  %v1735 = vshrl.u32 %v1734, 7
  %v1736 = vsub.s32 %v1733, %v1735
  %v1737 = vrot.slane %v1723, %v1736
  %v1738 = vlaneseq
  %v1739 = vshrl.u32 %v1738, 7
  %v1740 = vsub.s32 0, %v1739
  %v1741 = vrot.slane %v1730, %v1740
  %v1742 = vlaneseq
  %v1743 = vshrl.u32 %v1742, 7
  %v1744 = vsub.s32 0, %v1743
  %v1745 = vrot.slane %v1737, %v1744
  %v1748 = vadd.f32 %v32, %v1741
  %v1749 = vadd.f32 %v33, %v1745
  %v1750 = vtanh.pop %v1748
  %v1751 = vtanh.pop %v1749
  %v1752 = vmul.f32 %v1750, %v46
  %v1753 = vmul.f32 %v1751, %v46
  %v1754 = vsel %vm192, %v1752, 0.0
  %1755 = vadd.xlane.f32.xlu0 %v1754
  %v1756 = vpop.xlane.xlu0 %1755
  %v1757 = vsel %vm192, %v1753, 0.0
  %1758 = vadd.xlane.f32.xlu0 %v1757
  %v1759 = vpop.xlane.xlu0 %1758
  %v1760 = vmul.f32 %v1756, 1.442695
  %v1761 = vpow.pop %v1760
  %v1762 = vmul.f32 %v1759, 1.442695
  %v1763 = vpow.pop %v1762
  %v1766 = vlaneseq
  %v1767 = vshrl.u32 %v1766, 7
  %v1768 = vsub.s32 %v206, %v1767
  %v1769 = vrot.slane %v1761, %v1768
  %v1770 = vlaneseq
  %v1771 = vshrl.u32 %v1770, 7
  %v1772 = vsub.s32 %v206, %v1771
  %v1773 = vrot.slane %v1763, %v1772
  %v1774 = vsel %vm215, %v1773, %v1769
  %v1776 = vsel %vm218, %v1774, 0.0
  %1777 = vadd.xlane.f32.xlu0 %v1776
  %v1778 = vpop.xlane.xlu0 %1777
  %v1779 = vrcp.pop %v1778
  %v1781 = vlaneseq
  %v1782 = vshrl.u32 %v1781, 7
  %v1783 = vsub.s32 0, %v1782
  %v1784 = vrot.slane %v1779, %v1783
  %v1785 = vlaneseq
  %v1786 = vshrl.u32 %v1785, 7
  %v1787 = vsub.s32 1, %v1786
  %v1788 = vrot.slane %v1779, %v1787
  %v1791 = vmul.f32 %v1761, %v1784
  %v1792 = vmul.f32 %v1763, %v1788
  %s1794 = sor.u32 256, 20
  %1795 = vbcast.lane.b32.xlu0 %v240, %s1794
  %v1796 = vpop.permute.xlu0 %1795
  %s1798 = sor.u32 256, 20
  %1799 = vbcast.lane.b32.xlu0 %v247, %s1798
  %v1800 = vpop.permute.xlu0 %1799
  %v1803 = vmul.f32 %v1791, %v1796
  %v1804 = vmul.f32 %v1792, %v1800
  %v1805 = vpack.c.bf16 %v1803, %v1803
  %v1806 = vpack.c.bf16 %v1804, %v1804
  %v1809 = vunpack.c.l.b16 %v1805
  %v1810 = vunpack.c.l.b16 %v1806
  %1811 = vset.pattern.permute.xlu0 0
  %1812 = vperm.xlu0 %1811, %v1809
  %v1813 = vpop.permute.xlu0 %1812
  %1814 = vset.pattern.permute.xlu0 0
  %1815 = vperm.xlu0 %1814, %v1810
  %v1816 = vpop.permute.xlu0 %1815
  %v1817 = vlaneseq
  %v1818 = vshrl.u32 %v1817, 7
  %v1819 = vsub.s32 %v206, %v1818
  %v1820 = vrot.slane %v1813, %v1819
  %v1821 = vlaneseq
  %v1822 = vshrl.u32 %v1821, 7
  %v1823 = vsub.s32 %v206, %v1822
  %v1824 = vrot.slane %v1816, %v1823
  %v1825 = vsel %vm215, %v1824, %v1820
  %v1826 = vpack.c.b16 %v1825, %v1825
  %1828 = vrot.lane.b32.xlu0 %v1658, 120
  %v1829 = vpop.permute.xlu0 %1828
  %v1832 = vsel %vm281, %v1826, 0
  %1834 = vmatprep.subr.bf16.mxu0 0
  %1835 = vmatpush1.bf16.msra.mxu0 0
  %1836 = vmatprep.subr.bf16.mxu0 0
  %1837 = vmatpush1.bf16.msra.mxu0 0
  %1838 = vmatprep.subr.bf16.mxu0 0
  %1839 = vmatpush1.bf16.msra.mxu0 0
  %1840 = vmatprep.subr.bf16.mxu0 0
  %1841 = vmatpush1.bf16.msra.mxu0 0
  %1842 = vmatprep.subr.bf16.mxu0 0
  %1843 = vmatpush1.bf16.msra.mxu0 0
  %1844 = vmatprep.subr.bf16.mxu0 0
  %1845 = vmatpush1.bf16.msra.mxu0 0
  %1846 = vmatprep.subr.bf16.mxu0 0
  %1847 = vmatpush1.bf16.msra.mxu0 0
  %1848 = vmatprep.subr.bf16.mxu0 0
  %1849 = vmatpush1.bf16.msra.mxu0 %v287
  %1850 = vmatprep.subr.bf16.mxu0 0
  %1851 = vmatpush2.bf16.msra.mxu0 0
  %1852 = vmatprep.subr.bf16.mxu0 0
  %1853 = vmatpush2.bf16.msra.mxu0 0
  %1854 = vmatprep.subr.bf16.mxu0 0
  %1855 = vmatpush2.bf16.msra.mxu0 0
  %1856 = vmatprep.subr.bf16.mxu0 0
  %1857 = vmatpush2.bf16.msra.mxu0 0
  %1858 = vmatprep.subr.bf16.mxu0 0
  %1859 = vmatpush2.bf16.msra.mxu0 0
  %1860 = vmatprep.subr.bf16.mxu0 0
  %1861 = vmatpush2.bf16.msra.mxu0 0
  %1862 = vmatprep.subr.bf16.mxu0 0
  %1863 = vmatpush2.bf16.msra.mxu0 0
  %1864 = vmatprep.subr.bf16.mxu0 0
  %1865 = vmatpush2.bf16.msra.mxu0 0
  %1866 = vmatprep.mubr.bf16.mxu0 0
  %1867 = vmatmul.mubr.bf16.gmra.mxu0 %v1832
  %v1868 = vpop.f32.mrf.mxu0
  %v1869 = vadd.f32 %v1829, %v1868
  %v1870 = vpop.f32.mrf.mxu0
  %v1871 = vpop.f32.mrf.mxu0
  %v1872 = vpop.f32.mrf.mxu0
  %1873 = vdwg.mxu0
  %v1874 = vadd.f32 %v1869, %v53
  %v1875 = vxor.u32 %v1874, 2147483648
  %v1876 = vmul.f32 %v1875, 1.442695
  %v1877 = vpow.pop %v1876
  %v1878 = vadd.f32 %v1877, 1.0
  %v1879 = vrcp.pop %v1878
  %v1880 = vmul.f32 1.0, %v1879
  %v1881 = vtanh.pop %v1874
  %v1882 = vmul.f32 %v1880, %v1582
  %1884 = vrot.lane.b32.xlu0 %v1881, 80
  %v1885 = vpop.permute.xlu0 %1884
  %v1887 = vmul.f32 %v1880, %v1885
  %1889 = vrot.lane.b32.xlu0 %v1887, 16
  %v1890 = vpop.permute.xlu0 %1889
  %v1892 = vadd.f32 %v1882, %v1890
  %v1893 = vtanh.pop %v1892
  %1895 = vrot.lane.b32.xlu0 %v1893, 16
  %v1896 = vpop.permute.xlu0 %1895
  %v1898 = vmul.f32 %v1880, %v1896
  %1901 = vset.pattern.permute.xlu0 0
  %1902 = vperm.xlu0 %1901, %v1803
  %v1903 = vpop.permute.xlu0 %1902
  %1904 = vset.pattern.permute.xlu0 0
  %1905 = vperm.xlu0 %1904, %v1804
  %v1906 = vpop.permute.xlu0 %1905
  %v1907 = vadd.s32 %v206, 4294967276
  %v1908 = vlaneseq
  %v1909 = vshrl.u32 %v1908, 7
  %v1910 = vsub.s32 %v1907, %v1909
  %v1911 = vrot.slane %v1903, %v1910
  %v1912 = vlaneseq
  %v1913 = vshrl.u32 %v1912, 7
  %v1914 = vsub.s32 %v1907, %v1913
  %v1915 = vrot.slane %v1906, %v1914
  %v1916 = vsel %vm215, %v1915, %v1911
  %vm1918 = vcmask 189600
  %1919 = vst.msk [vmem:[%s8] sm:$0x3] %vm1918, %v1916
  %1921 = vrot.lane.b32.xlu0 %v1898, 48
  %v1922 = vpop.permute.xlu0 %1921
  %vm1924 = vcmask 779904
  %1925 = vst.msk [vmem:[%s9] sm:$0x3] %vm1924, %v1922
  %v1926 = vpack.c.bf16 %v1898, %v1898
  %1928 = vrot.lane.b32.xlu0 %v1926, 96
  %v1929 = vpop.permute.xlu0 %1928
  %v1931 = vsel %vm61, %v1929, 0
  %1933 = vmatprep.subr.bf16.mxu0 0
  %1934 = vmatpush1.bf16.msra.mxu0 0
  %1935 = vmatprep.subr.bf16.mxu0 0
  %1936 = vmatpush1.bf16.msra.mxu0 0
  %1937 = vmatprep.subr.bf16.mxu0 0
  %1938 = vmatpush1.bf16.msra.mxu0 0
  %1939 = vmatprep.subr.bf16.mxu0 0
  %1940 = vmatpush1.bf16.msra.mxu0 0
  %1941 = vmatprep.subr.bf16.mxu0 0
  %1942 = vmatpush1.bf16.msra.mxu0 0
  %1943 = vmatprep.subr.bf16.mxu0 0
  %1944 = vmatpush1.bf16.msra.mxu0 0
  %1945 = vmatprep.subr.bf16.mxu0 0
  %1946 = vmatpush1.bf16.msra.mxu0 0
  %1947 = vmatprep.subr.bf16.mxu0 0
  %1948 = vmatpush1.bf16.msra.mxu0 %v59
  %1949 = vmatprep.subr.bf16.mxu0 0
  %1950 = vmatpush2.bf16.msra.mxu0 0
  %1951 = vmatprep.subr.bf16.mxu0 0
  %1952 = vmatpush2.bf16.msra.mxu0 0
  %1953 = vmatprep.subr.bf16.mxu0 0
  %1954 = vmatpush2.bf16.msra.mxu0 0
  %1955 = vmatprep.subr.bf16.mxu0 0
  %1956 = vmatpush2.bf16.msra.mxu0 0
  %1957 = vmatprep.subr.bf16.mxu0 0
  %1958 = vmatpush2.bf16.msra.mxu0 0
  %1959 = vmatprep.subr.bf16.mxu0 0
  %1960 = vmatpush2.bf16.msra.mxu0 0
  %1961 = vmatprep.subr.bf16.mxu0 0
  %1962 = vmatpush2.bf16.msra.mxu0 0
  %1963 = vmatprep.subr.bf16.mxu0 0
  %1964 = vmatpush2.bf16.msra.mxu0 0
  %1965 = vmatprep.mubr.bf16.mxu0 0
  %1966 = vmatmul.mubr.bf16.gmra.mxu0 %v1931
  %v1967 = vpop.f32.mrf.mxu0
  %v1968 = vadd.f32 0.0, %v1967
  %v1969 = vpop.f32.mrf.mxu0
  %v1970 = vpop.f32.mrf.mxu0
  %v1971 = vpop.f32.mrf.mxu0
  %1972 = vdwg.mxu0
  %v1973 = vpack.c.bf16 %v1892, %v1892
  %1975 = vrot.lane.b32.xlu0 %v1973, 112
  %v1976 = vpop.permute.xlu0 %1975
  %v1978 = vsel %vm61, %v1976, 0
  %1980 = vmatprep.subr.bf16.mxu0 0
  %1981 = vmatpush1.bf16.msra.mxu0 0
  %1982 = vmatprep.subr.bf16.mxu0 0
  %1983 = vmatpush1.bf16.msra.mxu0 0
  %1984 = vmatprep.subr.bf16.mxu0 0
  %1985 = vmatpush1.bf16.msra.mxu0 0
  %1986 = vmatprep.subr.bf16.mxu0 0
  %1987 = vmatpush1.bf16.msra.mxu0 0
  %1988 = vmatprep.subr.bf16.mxu0 0
  %1989 = vmatpush1.bf16.msra.mxu0 0
  %1990 = vmatprep.subr.bf16.mxu0 0
  %1991 = vmatpush1.bf16.msra.mxu0 0
  %1992 = vmatprep.subr.bf16.mxu0 0
  %1993 = vmatpush1.bf16.msra.mxu0 0
  %1994 = vmatprep.subr.bf16.mxu0 0
  %1995 = vmatpush1.bf16.msra.mxu0 %v109
  %1996 = vmatprep.subr.bf16.mxu0 0
  %1997 = vmatpush2.bf16.msra.mxu0 0
  %1998 = vmatprep.subr.bf16.mxu0 0
  %1999 = vmatpush2.bf16.msra.mxu0 0
  %2000 = vmatprep.subr.bf16.mxu0 0
  %2001 = vmatpush2.bf16.msra.mxu0 0
  %2002 = vmatprep.subr.bf16.mxu0 0
  %2003 = vmatpush2.bf16.msra.mxu0 0
  %2004 = vmatprep.subr.bf16.mxu0 0
  %2005 = vmatpush2.bf16.msra.mxu0 0
  %2006 = vmatprep.subr.bf16.mxu0 0
  %2007 = vmatpush2.bf16.msra.mxu0 0
  %2008 = vmatprep.subr.bf16.mxu0 0
  %2009 = vmatpush2.bf16.msra.mxu0 0
  %2010 = vmatprep.subr.bf16.mxu0 0
  %2011 = vmatpush2.bf16.msra.mxu0 0
  %2012 = vmatprep.mubr.bf16.mxu0 0
  %2013 = vmatmul.mubr.bf16.gmra.mxu0 %v1978
  %v2014 = vpop.f32.mrf.mxu0
  %v2015 = vadd.f32 0.0, %v2014
  %v2016 = vpop.f32.mrf.mxu0
  %v2017 = vpop.f32.mrf.mxu0
  %v2018 = vpop.f32.mrf.mxu0
  %2019 = vdwg.mxu0
  %v2020 = vadd.f32 %v1968, %v2015
  %2021 = vrot.lane.b32.xlu0 %v34, 80
  %v2022 = vpop.permute.xlu0 %2021
  %v2024 = vadd.f32 %v2020, %v2022
  %v2027 = vunpack.c.l.s4 1966171168
  %v2028 = vunpack.c.0.s8 %v2027
  %v2029 = vlaneseq
  %v2030 = vshrl.u32 %v2029, 7
  %v2031 = vsub.s32 %v2028, %v2030
  %v2032 = vrot.slane %v2024, %v2031
  %v2033 = vcombine.high %v2032, %v2032
  %v2035 = vunpack.c.l.s4 1966171168
  %v2036 = vunpack.c.0.s8 %v2035
  %v2037 = vlaneseq
  %v2038 = vshrl.u32 %v2037, 7
  %v2039 = vsub.s32 %v2036, %v2038
  %v2040 = vrot.slane %v2032, %v2039
  %v2042 = vunpack.c.l.s4 1966171168
  %v2043 = vunpack.c.0.s8 %v2042
  %v2044 = vlaneseq
  %v2045 = vshrl.u32 %v2044, 7
  %v2046 = vsub.s32 %v2043, %v2045
  %v2047 = vrot.slane %v2033, %v2046
  %v2048 = vlaneseq
  %v2049 = vshrl.u32 %v2048, 7
  %v2050 = vsub.s32 0, %v2049
  %v2051 = vrot.slane %v2040, %v2050
  %v2052 = vlaneseq
  %v2053 = vshrl.u32 %v2052, 7
  %v2054 = vsub.s32 0, %v2053
  %v2055 = vrot.slane %v2047, %v2054
  %v2058 = vadd.f32 %v32, %v2051
  %v2059 = vadd.f32 %v33, %v2055
  %v2060 = vtanh.pop %v2058
  %v2061 = vtanh.pop %v2059
  %v2062 = vmul.f32 %v2060, %v46
  %v2063 = vmul.f32 %v2061, %v46
  %v2064 = vsel %vm192, %v2062, 0.0
  %2065 = vadd.xlane.f32.xlu0 %v2064
  %v2066 = vpop.xlane.xlu0 %2065
  %v2067 = vsel %vm192, %v2063, 0.0
  %2068 = vadd.xlane.f32.xlu0 %v2067
  %v2069 = vpop.xlane.xlu0 %2068
  %v2070 = vmul.f32 %v2066, 1.442695
  %v2071 = vpow.pop %v2070
  %v2072 = vmul.f32 %v2069, 1.442695
  %v2073 = vpow.pop %v2072
  %v2076 = vlaneseq
  %v2077 = vshrl.u32 %v2076, 7
  %v2078 = vsub.s32 %v206, %v2077
  %v2079 = vrot.slane %v2071, %v2078
  %v2080 = vlaneseq
  %v2081 = vshrl.u32 %v2080, 7
  %v2082 = vsub.s32 %v206, %v2081
  %v2083 = vrot.slane %v2073, %v2082
  %v2084 = vsel %vm215, %v2083, %v2079
  %v2086 = vsel %vm218, %v2084, 0.0
  %2087 = vadd.xlane.f32.xlu0 %v2086
  %v2088 = vpop.xlane.xlu0 %2087
  %v2089 = vrcp.pop %v2088
  %v2091 = vlaneseq
  %v2092 = vshrl.u32 %v2091, 7
  %v2093 = vsub.s32 0, %v2092
  %v2094 = vrot.slane %v2089, %v2093
  %v2095 = vlaneseq
  %v2096 = vshrl.u32 %v2095, 7
  %v2097 = vsub.s32 1, %v2096
  %v2098 = vrot.slane %v2089, %v2097
  %v2101 = vmul.f32 %v2071, %v2094
  %v2102 = vmul.f32 %v2073, %v2098
  %s2104 = sor.u32 256, 24
  %2105 = vbcast.lane.b32.xlu0 %v240, %s2104
  %v2106 = vpop.permute.xlu0 %2105
  %s2108 = sor.u32 256, 24
  %2109 = vbcast.lane.b32.xlu0 %v247, %s2108
  %v2110 = vpop.permute.xlu0 %2109
  %v2113 = vmul.f32 %v2101, %v2106
  %v2114 = vmul.f32 %v2102, %v2110
  %v2115 = vpack.c.bf16 %v2113, %v2113
  %v2116 = vpack.c.bf16 %v2114, %v2114
  %v2119 = vunpack.c.l.b16 %v2115
  %v2120 = vunpack.c.l.b16 %v2116
  %2121 = vset.pattern.permute.xlu0 0
  %2122 = vperm.xlu0 %2121, %v2119
  %v2123 = vpop.permute.xlu0 %2122
  %2124 = vset.pattern.permute.xlu0 0
  %2125 = vperm.xlu0 %2124, %v2120
  %v2126 = vpop.permute.xlu0 %2125
  %v2127 = vlaneseq
  %v2128 = vshrl.u32 %v2127, 7
  %v2129 = vsub.s32 %v206, %v2128
  %v2130 = vrot.slane %v2123, %v2129
  %v2131 = vlaneseq
  %v2132 = vshrl.u32 %v2131, 7
  %v2133 = vsub.s32 %v206, %v2132
  %v2134 = vrot.slane %v2126, %v2133
  %v2135 = vsel %vm215, %v2134, %v2130
  %v2136 = vpack.c.b16 %v2135, %v2135
  %2138 = vrot.lane.b32.xlu0 %v1968, 120
  %v2139 = vpop.permute.xlu0 %2138
  %v2142 = vsel %vm281, %v2136, 0
  %2144 = vmatprep.subr.bf16.mxu0 0
  %2145 = vmatpush1.bf16.msra.mxu0 0
  %2146 = vmatprep.subr.bf16.mxu0 0
  %2147 = vmatpush1.bf16.msra.mxu0 0
  %2148 = vmatprep.subr.bf16.mxu0 0
  %2149 = vmatpush1.bf16.msra.mxu0 0
  %2150 = vmatprep.subr.bf16.mxu0 0
  %2151 = vmatpush1.bf16.msra.mxu0 0
  %2152 = vmatprep.subr.bf16.mxu0 0
  %2153 = vmatpush1.bf16.msra.mxu0 0
  %2154 = vmatprep.subr.bf16.mxu0 0
  %2155 = vmatpush1.bf16.msra.mxu0 0
  %2156 = vmatprep.subr.bf16.mxu0 0
  %2157 = vmatpush1.bf16.msra.mxu0 0
  %2158 = vmatprep.subr.bf16.mxu0 0
  %2159 = vmatpush1.bf16.msra.mxu0 %v287
  %2160 = vmatprep.subr.bf16.mxu0 0
  %2161 = vmatpush2.bf16.msra.mxu0 0
  %2162 = vmatprep.subr.bf16.mxu0 0
  %2163 = vmatpush2.bf16.msra.mxu0 0
  %2164 = vmatprep.subr.bf16.mxu0 0
  %2165 = vmatpush2.bf16.msra.mxu0 0
  %2166 = vmatprep.subr.bf16.mxu0 0
  %2167 = vmatpush2.bf16.msra.mxu0 0
  %2168 = vmatprep.subr.bf16.mxu0 0
  %2169 = vmatpush2.bf16.msra.mxu0 0
  %2170 = vmatprep.subr.bf16.mxu0 0
  %2171 = vmatpush2.bf16.msra.mxu0 0
  %2172 = vmatprep.subr.bf16.mxu0 0
  %2173 = vmatpush2.bf16.msra.mxu0 0
  %2174 = vmatprep.subr.bf16.mxu0 0
  %2175 = vmatpush2.bf16.msra.mxu0 0
  %2176 = vmatprep.mubr.bf16.mxu0 0
  %2177 = vmatmul.mubr.bf16.gmra.mxu0 %v2142
  %v2178 = vpop.f32.mrf.mxu0
  %v2179 = vadd.f32 %v2139, %v2178
  %v2180 = vpop.f32.mrf.mxu0
  %v2181 = vpop.f32.mrf.mxu0
  %v2182 = vpop.f32.mrf.mxu0
  %2183 = vdwg.mxu0
  %v2184 = vadd.f32 %v2179, %v53
  %v2185 = vxor.u32 %v2184, 2147483648
  %v2186 = vmul.f32 %v2185, 1.442695
  %v2187 = vpow.pop %v2186
  %v2188 = vadd.f32 %v2187, 1.0
  %v2189 = vrcp.pop %v2188
  %v2190 = vmul.f32 1.0, %v2189
  %v2191 = vtanh.pop %v2184
  %v2192 = vmul.f32 %v2190, %v1892
  %2194 = vrot.lane.b32.xlu0 %v2191, 80
  %v2195 = vpop.permute.xlu0 %2194
  %v2197 = vmul.f32 %v2190, %v2195
  %2199 = vrot.lane.b32.xlu0 %v2197, 16
  %v2200 = vpop.permute.xlu0 %2199
  %v2202 = vadd.f32 %v2192, %v2200
  %v2203 = vtanh.pop %v2202
  %2205 = vrot.lane.b32.xlu0 %v2203, 16
  %v2206 = vpop.permute.xlu0 %2205
  %v2208 = vmul.f32 %v2190, %v2206
  %2211 = vset.pattern.permute.xlu0 0
  %2212 = vperm.xlu0 %2211, %v2113
  %v2213 = vpop.permute.xlu0 %2212
  %2214 = vset.pattern.permute.xlu0 0
  %2215 = vperm.xlu0 %2214, %v2114
  %v2216 = vpop.permute.xlu0 %2215
  %v2217 = vadd.s32 %v206, 4294967272
  %v2218 = vlaneseq
  %v2219 = vshrl.u32 %v2218, 7
  %v2220 = vsub.s32 %v2217, %v2219
  %v2221 = vrot.slane %v2213, %v2220
  %v2222 = vlaneseq
  %v2223 = vshrl.u32 %v2222, 7
  %v2224 = vsub.s32 %v2217, %v2223
  %v2225 = vrot.slane %v2216, %v2224
  %v2226 = vsel %vm215, %v2225, %v2221
  %vm2228 = vcmask 222400
  %2229 = vst.msk [vmem:[%s8] sm:$0x3] %vm2228, %v2226
  %2231 = vrot.lane.b32.xlu0 %v2208, 64
  %v2232 = vpop.permute.xlu0 %2231
  %vm2234 = vcmask 911104
  %2235 = vst.msk [vmem:[%s9] sm:$0x3] %vm2234, %v2232
  // Predicated region
  $region34: #{second_stage_pallas.1} parent=0 // pred_check
    _
  $region35: #{second_stage_pallas.1} parent=0 // pred_check_branch
    %2237 = sbr.rel (0) target = $region37
  $region36: #{second_stage_pallas.1} parent=0 // pred_region
    _
  $region37: #{second_stage_pallas.1} parent=0 // pred_fallthru
    _
  // Predicated region
  $region38: #{second_stage_pallas.1} parent=0 // pred_check
    _
  $region39: #{second_stage_pallas.1} parent=0 // pred_check_branch
    %2239 = sbr.rel (0) target = $region41
  $region40: #{second_stage_pallas.1} parent=0 // pred_region
    _
  $region41: #{second_stage_pallas.1} parent=0 // pred_fallthru
    _
  // Predicated region
  $region42: #{second_stage_pallas.1} parent=0 // pred_check
    _
  $region43: #{second_stage_pallas.1} parent=0 // pred_check_branch
    %2241 = sbr.rel (0) target = $region45
  $region44: #{second_stage_pallas.1} parent=0 // pred_region
    _
  $region45: #{second_stage_pallas.1} parent=0 // pred_fallthru
    _
  // Predicated region
  $region46: #{second_stage_pallas.1} parent=0 // pred_check
    _
  $region47: #{second_stage_pallas.1} parent=0 // pred_check_branch
    %2243 = sbr.rel (0) target = $region49
  $region48: #{second_stage_pallas.1} parent=0 // pred_region
    _
  $region49: #{second_stage_pallas.1} parent=0 // pred_fallthru
    _

</llo_original>
